<compile_context>
chip_gen: v6e
topology: v6e:2x2x1
jax: 0.10.0
libtpu: 0.0.40
codegen_flags: <defaults>
</compile_context>

<pallas_src>
import jax
import jax.numpy as jnp
from jax.experimental import pallas as pl
from jax.experimental.pallas import tpu as pltpu


MATMUL_DTYPE = jnp.bfloat16   # MXU operand dtype (accumulation stays f32)

# Constants-slab row layout (f32, shape (8, 128)):
#   rows 0..2 : conv tap k weights, lanes [0:C]
#   row  3    : conv bias,          lanes [0:C]
#   row  4    : b_gi = [b_ir+b_hr | b_iz+b_hz | b_in], lanes [0:3H]
#   row  5    : b_hn,               lanes [0:H]
#   row  6    : fc bias,            lanes [0:O]
#   row  7    : padding


def cnn_gru_kernel(xt_ref, wih_ref, whh_ref, slab_ref, fcw_ref,
                   out_ref, gi_ref):
    L, B = xt_ref.shape
    C = wih_ref.shape[0]          # 16 conv channels
    H = whh_ref.shape[0]          # hidden size
    H3 = 3 * H
    O = fcw_ref.shape[1]

    slab = slab_ref[...]          # (8, 128) f32 constants

    # ---- Conv1d(1, C, k=3, pad=1) + ReLU, t-major layout ---------------------
    # x arrives already transposed to (L, B) (pure layout plumbing in the
    # wrapper).  Zero-pad the sequence (sublane) axis in-kernel and hoist the
    # lane->minor relayout out of the 3-tap loop (single expand_dims; tap
    # windows are then leading-dim slices).
    xt = xt_ref[...]                                              # (L, B)
    zero_row = jnp.zeros((1, B), jnp.float32)
    xp3 = jnp.concatenate([zero_row, xt, zero_row], axis=0)[:, :, None]  # (L+2,B,1)

    conv = jnp.zeros((L, B, C), jnp.float32)
    for k in range(3):                                            # static tap unroll
        conv = conv + xp3[k:k + L] * slab[k:k + 1, 0:C][None, :, :]
    conv_b = slab[3:4, 0:C]                                       # (1, C)
    # Bias + ReLU folded into the matmul-ready t-major (L*B, C) layout.
    h_in = jnp.maximum(conv.reshape(L * B, C) + conv_b, 0.0)
    h_in = h_in.astype(MATMUL_DTYPE)

    # ---- Fused GRU input projections for all timesteps (one MXU matmul) ------
    # b_gi pre-folds the biases that do not interact with the reset gate:
    #   [b_ir+b_hr | b_iz+b_hz | b_in];  b_hn stays per-step (r-gated).
    b_gi = slab[4:5, 0:H3]                                        # (1, 3H)
    gi_all = jnp.dot(h_in, wih_ref[...],
                     preferred_element_type=jnp.float32) + b_gi   # (L*B, 3H)
    # Timestep on the leading (untiled) axis so ref[t] is a whole-tile load.
    gi_ref[...] = gi_all.reshape(L, B, H3)

    whh = whh_ref[...]                                            # (H, 3H) bf16
    b_hn = slab[5:6, 0:H]                                         # (1, H)

    # ---- GRU recurrence, fully unrolled (L is a compile-time constant) -------
    # Step 0: h == 0, so the recurrent matmul is skipped entirely.
    gi0 = gi_ref[0]                                               # (B, 3H)
    rz0 = jax.nn.sigmoid(gi0[:, 0:2 * H])
    r0 = rz0[:, 0:H]
    z0 = rz0[:, H:2 * H]
    n0 = jnp.tanh(gi0[:, 2 * H:H3] + r0 * b_hn)
    h = n0 - z0 * n0                                              # (1 - z0) * n0

    for t in range(1, L):
        gi = gi_ref[t]                                            # (B, 3H) static load
        gh = jnp.dot(h.astype(MATMUL_DTYPE), whh,
                     preferred_element_type=jnp.float32)          # ONE MXU push/step
        rz = jax.nn.sigmoid(gi[:, 0:2 * H] + gh[:, 0:2 * H])      # r|z in one EUP pass
        r = rz[:, 0:H]
        z = rz[:, H:2 * H]
        n = jnp.tanh(gi[:, 2 * H:H3] + r * (gh[:, 2 * H:H3] + b_hn))
        h = n + z * (h - n)                                       # (1-z)*n + z*h

    # ---- fc1 on the last hidden state ----------------------------------------
    fc_b = slab[6:7, 0:O]
    out_ref[...] = (jnp.dot(h, fcw_ref[...],
                            preferred_element_type=jnp.float32) + fc_b)


def cnn_gru_forward(x, kparams):
    wih, whh, slab, fcw = kparams
    B, L = x.shape
    H = whh.shape[0]
    O = fcw.shape[1]

    vmem = pl.BlockSpec(memory_space=pltpu.MemorySpace.VMEM)
    # No grid: everything fits in VMEM with large headroom at these shapes.
    # For large B (esp. v7x), grid over batch with dimension_semantics=("parallel",)
    # and constant weight index_maps so both TensorCores share the work.
    return pl.pallas_call(
        cnn_gru_kernel,
        out_shape=jax.ShapeDtypeStruct((B, O), jnp.float32),
        in_specs=[vmem] * 5,
        out_specs=vmem,
        scratch_shapes=[pltpu.VMEM((L, B, 3 * H), jnp.float32)],
    )(x.T, wih, whh, slab, fcw)     # x.T: layout plumbing only (t-major kernel layout)


def init_params(key, input_size, hidden_size, output_size):
    """Parameters in PyTorch layout (gate order [r, z, n])."""
    C = 16
    H = hidden_size
    ks = jax.random.split(key, 8)
    u = lambda k, shape, bound: jax.random.uniform(
        k, shape, jnp.float32, minval=-bound, maxval=bound)
    conv_bound = (1.0 / 3.0) ** 0.5
    conv_w = u(ks[0], (C, 3), conv_bound)          # Conv1d(1,16,3).weight (in-ch squeezed)
    conv_b = u(ks[1], (C,), conv_bound)
    gru_bound = 1.0 / (H ** 0.5)
    w_ih = u(ks[2], (3 * H, C), gru_bound)
    w_hh = u(ks[3], (3 * H, H), gru_bound)
    b_ih = u(ks[4], (3 * H,), gru_bound)
    b_hh = u(ks[5], (3 * H,), gru_bound)
    fc_bound = 1.0 / (H ** 0.5)
    fc_w = u(ks[6], (output_size, H), fc_bound)    # nn.Linear weight (O, H)
    fc_b = u(ks[7], (output_size,), fc_bound)
    return (conv_w, conv_b, w_ih, w_hh, b_ih, b_hh, fc_w, fc_b)


def prepare_kernel_params(params, *, hidden_size):
    """One-time host-side prep: gate-major packing, bias folding, bf16 cast,
    and packing all small constants into a single lane-aligned f32 slab
    (5 kernel inputs / DMAs total instead of 15)."""
    conv_w, conv_b, w_ih, w_hh, b_ih, b_hh, fc_w, fc_b = params
    H = hidden_size
    C = conv_w.shape[0]
    O = fc_w.shape[0]
    assert 3 * H <= 128 and C <= 128 and O <= 128

    # PyTorch packs rows as [r; z; n]; transposing gives lane-packed [r | z | n].
    wih = w_ih.T.astype(MATMUL_DTYPE)              # (C, 3H)
    whh = w_hh.T.astype(MATMUL_DTYPE)              # (H, 3H)

    b_gi = jnp.concatenate([b_ih[0:H] + b_hh[0:H],           # r: fold both biases
                            b_ih[H:2 * H] + b_hh[H:2 * H],   # z: fold both biases
                            b_ih[2 * H:3 * H]])              # n: input-side bias only
    b_hn = b_hh[2 * H:3 * H]                                  # n: hidden-side (r-gated)

    slab = jnp.zeros((8, 128), jnp.float32)
    slab = slab.at[0:3, 0:C].set(conv_w.T)         # tap-major conv weight (3, C)
    slab = slab.at[3, 0:C].set(conv_b)
    slab = slab.at[4, 0:3 * H].set(b_gi)
    slab = slab.at[5, 0:H].set(b_hn)
    slab = slab.at[6, 0:O].set(fc_b)

    fcw = fc_w.T                                   # (H, O)
    return (wih, whh, slab, fcw)


def reference_forward(x, params, *, hidden_size, matmul_dtype=jnp.float32):
    """Pure-JAX reference matching PyTorch semantics (optionally bf16 MXU operands)."""
    conv_w, conv_b, w_ih, w_hh, b_ih, b_hh, fc_w, fc_b = params
    B, L = x.shape
    H = hidden_size
    md = matmul_dtype

    xp = jnp.pad(x, ((0, 0), (1, 1)))
    taps = jnp.stack([xp[:, k:k + L] for k in range(3)], axis=-1)     # (B, L, 3)
    conv = taps @ conv_w.T + conv_b                                   # (B, L, C)
    hi = jnp.maximum(conv, 0.0)

    w_ih_t = w_ih.T.astype(md)
    w_hh_t = w_hh.T.astype(md)
    h = jnp.zeros((B, H), jnp.float32)
    for t in range(L):
        gi = jnp.dot(hi[:, t, :].astype(md), w_ih_t,
                     preferred_element_type=jnp.float32) + b_ih
        gh = jnp.dot(h.astype(md), w_hh_t,
                     preferred_element_type=jnp.float32) + b_hh
        r = jax.nn.sigmoid(gi[:, :H] + gh[:, :H])
        z = jax.nn.sigmoid(gi[:, H:2 * H] + gh[:, H:2 * H])
        n = jnp.tanh(gi[:, 2 * H:] + r * gh[:, 2 * H:])
        h = (1.0 - z) * n + z * h
    return jnp.dot(h, fc_w.T) + fc_b


if __name__ == "__main__":
    B, INPUT_SIZE, HIDDEN, OUT = 2, 16, 32, 4

    key = jax.random.PRNGKey(0)
    k_x, k_p = jax.random.split(key)
    x = jax.random.normal(k_x, (B, INPUT_SIZE), jnp.float32)
    params = init_params(k_p, INPUT_SIZE, HIDDEN, OUT)
    kparams = prepare_kernel_params(params, hidden_size=HIDDEN)

    out = cnn_gru_forward(x, kparams)
    out = jax.block_until_ready(out)
    assert out.shape == (B, OUT)

    # Structural check: reference using the same bf16 MXU-operand rounding.
    ref_bf16 = reference_forward(x, params, hidden_size=HIDDEN,
                                 matmul_dtype=MATMUL_DTYPE)
    assert jnp.allclose(out, ref_bf16, atol=5e-3, rtol=5e-3), \
        "mismatch vs bf16-operand reference"

    # Semantic check: full-f32 PyTorch-equivalent reference (loose tolerance
    # accounts only for bf16 MXU operand rounding inside the kernel).
    ref_f32 = reference_forward(x, params, hidden_size=HIDDEN,
                                matmul_dtype=jnp.float32)
    assert jnp.allclose(out, ref_f32, atol=1e-1, rtol=1e-1), \
        "mismatch vs f32 reference"

    print("KERNEL_OK")
</pallas_src>

<mosaic_0001>
module attributes {stable_mosaic.version = 11 : i64} {
  func.func @cnn_gru_kernel(%arg0: memref<16x2xf32, #tpu.memory_space<vmem>>, %arg1: memref<16x96xbf16, #tpu.memory_space<vmem>>, %arg2: memref<32x96xbf16, #tpu.memory_space<vmem>>, %arg3: memref<8x128xf32, #tpu.memory_space<vmem>>, %arg4: memref<32x4xf32, #tpu.memory_space<vmem>>, %arg5: memref<2x4xf32, #tpu.memory_space<vmem>>, %arg6: memref<16x2x96xf32, #tpu.memory_space<vmem>>) attributes {dimension_semantics = [], scalar_prefetch = 0 : i64, scratch_operands = 1 : i64, tpu.core_type = #tpu.core_type<tc>} {
    %c0 = arith.constant 0 : index
    %c0_0 = arith.constant 0 : index
    %0 = vector.load %arg3[%c0, %c0_0] : memref<8x128xf32, #tpu.memory_space<vmem>>, vector<8x128xf32>
    %c0_1 = arith.constant 0 : index
    %c0_2 = arith.constant 0 : index
    %1 = vector.load %arg0[%c0_1, %c0_2] : memref<16x2xf32, #tpu.memory_space<vmem>>, vector<16x2xf32>
    %cst = arith.constant 0.000000e+00 : f32
    %2 = vector.broadcast %cst : f32 to vector<1x2xf32>
    %3 = tpu.concatenate %2, %1, %2 in 0 : vector<1x2xf32>, vector<16x2xf32>, vector<1x2xf32> -> vector<18x2xf32>
    %4 = vector.shape_cast %3 : vector<18x2xf32> to vector<18x2x1xf32>
    %cst_3 = arith.constant 0.000000e+00 : f32
    %5 = vector.broadcast %cst_3 : f32 to vector<16x2x16xf32>
    %6 = vector.extract_strided_slice %4 {offsets = [0, 0, 0], sizes = [16, 2, 1], strides = [1, 1, 1]} : vector<18x2x1xf32> to vector<16x2x1xf32>
    %7 = vector.extract_strided_slice %0 {offsets = [0, 0], sizes = [1, 16], strides = [1, 1]} : vector<8x128xf32> to vector<1x16xf32>
    %8 = vector.shape_cast %7 : vector<1x16xf32> to vector<1x1x16xf32>
    %9 = vector.broadcast %6 : vector<16x2x1xf32> to vector<16x2x16xf32>
    %10 = vector.broadcast %8 : vector<1x1x16xf32> to vector<16x2x16xf32>
    %11 = arith.mulf %9, %10 : vector<16x2x16xf32>
    %12 = arith.addf %5, %11 : vector<16x2x16xf32>
    %13 = vector.extract_strided_slice %4 {offsets = [1, 0, 0], sizes = [16, 2, 1], strides = [1, 1, 1]} : vector<18x2x1xf32> to vector<16x2x1xf32>
    %14 = vector.extract_strided_slice %0 {offsets = [1, 0], sizes = [1, 16], strides = [1, 1]} : vector<8x128xf32> to vector<1x16xf32>
    %15 = vector.shape_cast %14 : vector<1x16xf32> to vector<1x1x16xf32>
    %16 = vector.broadcast %13 : vector<16x2x1xf32> to vector<16x2x16xf32>
    %17 = vector.broadcast %15 : vector<1x1x16xf32> to vector<16x2x16xf32>
    %18 = arith.mulf %16, %17 : vector<16x2x16xf32>
    %19 = arith.addf %12, %18 : vector<16x2x16xf32>
    %20 = vector.extract_strided_slice %4 {offsets = [2, 0, 0], sizes = [16, 2, 1], strides = [1, 1, 1]} : vector<18x2x1xf32> to vector<16x2x1xf32>
    %21 = vector.extract_strided_slice %0 {offsets = [2, 0], sizes = [1, 16], strides = [1, 1]} : vector<8x128xf32> to vector<1x16xf32>
    %22 = vector.shape_cast %21 : vector<1x16xf32> to vector<1x1x16xf32>
    %23 = vector.broadcast %20 : vector<16x2x1xf32> to vector<16x2x16xf32>
    %24 = vector.broadcast %22 : vector<1x1x16xf32> to vector<16x2x16xf32>
    %25 = arith.mulf %23, %24 : vector<16x2x16xf32>
    %26 = arith.addf %19, %25 : vector<16x2x16xf32>
    %27 = vector.extract_strided_slice %0 {offsets = [3, 0], sizes = [1, 16], strides = [1, 1]} : vector<8x128xf32> to vector<1x16xf32>
    %28 = vector.shape_cast %26 : vector<16x2x16xf32> to vector<32x16xf32>
    %29 = vector.broadcast %27 : vector<1x16xf32> to vector<32x16xf32>
    %30 = arith.addf %28, %29 : vector<32x16xf32>
    %cst_4 = arith.constant 0.000000e+00 : f32
    %31 = vector.broadcast %cst_4 : f32 to vector<32x16xf32>
    %32 = arith.maximumf %30, %31 : vector<32x16xf32>
    %33 = arith.truncf %32 : vector<32x16xf32> to vector<32x16xbf16>
    %34 = vector.extract_strided_slice %0 {offsets = [4, 0], sizes = [1, 96], strides = [1, 1]} : vector<8x128xf32> to vector<1x96xf32>
    %c0_5 = arith.constant 0 : index
    %c0_6 = arith.constant 0 : index
    %35 = vector.load %arg1[%c0_5, %c0_6] : memref<16x96xbf16, #tpu.memory_space<vmem>>, vector<16x96xbf16>
    %cst_7 = arith.constant dense<0.000000e+00> : vector<32x96xf32>
    %36 = tpu.matmul %33, %35, %cst_7 {dimension_numbers = #tpu.dot_dimension_numbers<[1], [0], [0], [1], [0, 0, 1, 1], [], []>} : vector<32x16xbf16>, vector<16x96xbf16>, vector<32x96xf32> -> vector<32x96xf32>
    %37 = vector.broadcast %34 : vector<1x96xf32> to vector<32x96xf32>
    %38 = arith.addf %36, %37 : vector<32x96xf32>
    %39 = vector.shape_cast %38 : vector<32x96xf32> to vector<16x2x96xf32>
    %c0_8 = arith.constant 0 : index
    %c0_9 = arith.constant 0 : index
    %c0_10 = arith.constant 0 : index
    %40 = vector.load %arg6[%c0_8, %c0_9, %c0_10] : memref<16x2x96xf32, #tpu.memory_space<vmem>>, vector<16x2x96xf32>
    tpu.vector_store %arg6[%c0_8, %c0_9, %c0_10], %39 {strides = array<i32>} : memref<16x2x96xf32, #tpu.memory_space<vmem>>, vector<16x2x96xf32>,
    %c0_11 = arith.constant 0 : index
    %c0_12 = arith.constant 0 : index
    %41 = vector.load %arg2[%c0_11, %c0_12] : memref<32x96xbf16, #tpu.memory_space<vmem>>, vector<32x96xbf16>
    %42 = vector.extract_strided_slice %0 {offsets = [5, 0], sizes = [1, 32], strides = [1, 1]} : vector<8x128xf32> to vector<1x32xf32>
    %c0_13 = arith.constant 0 : index
    %c0_14 = arith.constant 0 : index
    %c0_15 = arith.constant 0 : index
    %43 = vector.load %arg6[%c0_13, %c0_14, %c0_15] : memref<16x2x96xf32, #tpu.memory_space<vmem>>, vector<1x2x96xf32>
    %44 = vector.shape_cast %43 : vector<1x2x96xf32> to vector<2x96xf32>
    %45 = vector.extract_strided_slice %44 {offsets = [0, 0], sizes = [2, 64], strides = [1, 1]} : vector<2x96xf32> to vector<2x64xf32>
    %46 = arith.negf %45 : vector<2x64xf32>
    %47 = math.exp %46 : vector<2x64xf32>
    %cst_16 = arith.constant 1.000000e+00 : f32
    %48 = vector.broadcast %cst_16 : f32 to vector<2x64xf32>
    %49 = arith.addf %48, %47 : vector<2x64xf32>
    %50 = arith.divf %48, %49 : vector<2x64xf32>
    %51 = vector.extract_strided_slice %50 {offsets = [0, 0], sizes = [2, 32], strides = [1, 1]} : vector<2x64xf32> to vector<2x32xf32>
    %52 = vector.extract_strided_slice %50 {offsets = [0, 32], sizes = [2, 32], strides = [1, 1]} : vector<2x64xf32> to vector<2x32xf32>
    %53 = vector.extract_strided_slice %44 {offsets = [0, 64], sizes = [2, 32], strides = [1, 1]} : vector<2x96xf32> to vector<2x32xf32>
    %54 = vector.broadcast %42 : vector<1x32xf32> to vector<2x32xf32>
    %55 = arith.mulf %51, %54 : vector<2x32xf32>
    %56 = arith.addf %53, %55 : vector<2x32xf32>
    %57 = math.tanh %56 : vector<2x32xf32>
    %58 = arith.mulf %52, %57 : vector<2x32xf32>
    %59 = arith.subf %57, %58 : vector<2x32xf32>
    %c1 = arith.constant 1 : index
    %c0_17 = arith.constant 0 : index
    %c0_18 = arith.constant 0 : index
    %60 = vector.load %arg6[%c1, %c0_17, %c0_18] : memref<16x2x96xf32, #tpu.memory_space<vmem>>, vector<1x2x96xf32>
    %61 = vector.shape_cast %60 : vector<1x2x96xf32> to vector<2x96xf32>
    %62 = arith.truncf %59 : vector<2x32xf32> to vector<2x32xbf16>
    %cst_19 = arith.constant dense<0.000000e+00> : vector<2x96xf32>
    %63 = tpu.matmul %62, %41, %cst_19 {dimension_numbers = #tpu.dot_dimension_numbers<[1], [0], [0], [1], [0, 0, 1, 1], [], []>} : vector<2x32xbf16>, vector<32x96xbf16>, vector<2x96xf32> -> vector<2x96xf32>
    %64 = vector.extract_strided_slice %61 {offsets = [0, 0], sizes = [2, 64], strides = [1, 1]} : vector<2x96xf32> to vector<2x64xf32>
    %65 = vector.extract_strided_slice %63 {offsets = [0, 0], sizes = [2, 64], strides = [1, 1]} : vector<2x96xf32> to vector<2x64xf32>
    %66 = arith.addf %64, %65 : vector<2x64xf32>
    %67 = arith.negf %66 : vector<2x64xf32>
    %68 = math.exp %67 : vector<2x64xf32>
    %cst_20 = arith.constant 1.000000e+00 : f32
    %69 = vector.broadcast %cst_20 : f32 to vector<2x64xf32>
    %70 = arith.addf %69, %68 : vector<2x64xf32>
    %71 = arith.divf %69, %70 : vector<2x64xf32>
    %72 = vector.extract_strided_slice %71 {offsets = [0, 0], sizes = [2, 32], strides = [1, 1]} : vector<2x64xf32> to vector<2x32xf32>
    %73 = vector.extract_strided_slice %71 {offsets = [0, 32], sizes = [2, 32], strides = [1, 1]} : vector<2x64xf32> to vector<2x32xf32>
    %74 = vector.extract_strided_slice %61 {offsets = [0, 64], sizes = [2, 32], strides = [1, 1]} : vector<2x96xf32> to vector<2x32xf32>
    %75 = vector.extract_strided_slice %63 {offsets = [0, 64], sizes = [2, 32], strides = [1, 1]} : vector<2x96xf32> to vector<2x32xf32>
    %76 = vector.broadcast %42 : vector<1x32xf32> to vector<2x32xf32>
    %77 = arith.addf %75, %76 : vector<2x32xf32>
    %78 = arith.mulf %72, %77 : vector<2x32xf32>
    %79 = arith.addf %74, %78 : vector<2x32xf32>
    %80 = math.tanh %79 : vector<2x32xf32>
    %81 = arith.subf %59, %80 : vector<2x32xf32>
    %82 = arith.mulf %73, %81 : vector<2x32xf32>
    %83 = arith.addf %80, %82 : vector<2x32xf32>
    %c2 = arith.constant 2 : index
    %c0_21 = arith.constant 0 : index
    %c0_22 = arith.constant 0 : index
    %84 = vector.load %arg6[%c2, %c0_21, %c0_22] : memref<16x2x96xf32, #tpu.memory_space<vmem>>, vector<1x2x96xf32>
    %85 = vector.shape_cast %84 : vector<1x2x96xf32> to vector<2x96xf32>
    %86 = arith.truncf %83 : vector<2x32xf32> to vector<2x32xbf16>
    %cst_23 = arith.constant dense<0.000000e+00> : vector<2x96xf32>
    %87 = tpu.matmul %86, %41, %cst_23 {dimension_numbers = #tpu.dot_dimension_numbers<[1], [0], [0], [1], [0, 0, 1, 1], [], []>} : vector<2x32xbf16>, vector<32x96xbf16>, vector<2x96xf32> -> vector<2x96xf32>
    %88 = vector.extract_strided_slice %85 {offsets = [0, 0], sizes = [2, 64], strides = [1, 1]} : vector<2x96xf32> to vector<2x64xf32>
    %89 = vector.extract_strided_slice %87 {offsets = [0, 0], sizes = [2, 64], strides = [1, 1]} : vector<2x96xf32> to vector<2x64xf32>
    %90 = arith.addf %88, %89 : vector<2x64xf32>
    %91 = arith.negf %90 : vector<2x64xf32>
    %92 = math.exp %91 : vector<2x64xf32>
    %cst_24 = arith.constant 1.000000e+00 : f32
    %93 = vector.broadcast %cst_24 : f32 to vector<2x64xf32>
    %94 = arith.addf %93, %92 : vector<2x64xf32>
    %95 = arith.divf %93, %94 : vector<2x64xf32>
    %96 = vector.extract_strided_slice %95 {offsets = [0, 0], sizes = [2, 32], strides = [1, 1]} : vector<2x64xf32> to vector<2x32xf32>
    %97 = vector.extract_strided_slice %95 {offsets = [0, 32], sizes = [2, 32], strides = [1, 1]} : vector<2x64xf32> to vector<2x32xf32>
    %98 = vector.extract_strided_slice %85 {offsets = [0, 64], sizes = [2, 32], strides = [1, 1]} : vector<2x96xf32> to vector<2x32xf32>
    %99 = vector.extract_strided_slice %87 {offsets = [0, 64], sizes = [2, 32], strides = [1, 1]} : vector<2x96xf32> to vector<2x32xf32>
    %100 = vector.broadcast %42 : vector<1x32xf32> to vector<2x32xf32>
    %101 = arith.addf %99, %100 : vector<2x32xf32>
    %102 = arith.mulf %96, %101 : vector<2x32xf32>
    %103 = arith.addf %98, %102 : vector<2x32xf32>
    %104 = math.tanh %103 : vector<2x32xf32>
    %105 = arith.subf %83, %104 : vector<2x32xf32>
    %106 = arith.mulf %97, %105 : vector<2x32xf32>
    %107 = arith.addf %104, %106 : vector<2x32xf32>
    %c3 = arith.constant 3 : index
    %c0_25 = arith.constant 0 : index
    %c0_26 = arith.constant 0 : index
    %108 = vector.load %arg6[%c3, %c0_25, %c0_26] : memref<16x2x96xf32, #tpu.memory_space<vmem>>, vector<1x2x96xf32>
    %109 = vector.shape_cast %108 : vector<1x2x96xf32> to vector<2x96xf32>
    %110 = arith.truncf %107 : vector<2x32xf32> to vector<2x32xbf16>
    %cst_27 = arith.constant dense<0.000000e+00> : vector<2x96xf32>
    %111 = tpu.matmul %110, %41, %cst_27 {dimension_numbers = #tpu.dot_dimension_numbers<[1], [0], [0], [1], [0, 0, 1, 1], [], []>} : vector<2x32xbf16>, vector<32x96xbf16>, vector<2x96xf32> -> vector<2x96xf32>
    %112 = vector.extract_strided_slice %109 {offsets = [0, 0], sizes = [2, 64], strides = [1, 1]} : vector<2x96xf32> to vector<2x64xf32>
    %113 = vector.extract_strided_slice %111 {offsets = [0, 0], sizes = [2, 64], strides = [1, 1]} : vector<2x96xf32> to vector<2x64xf32>
    %114 = arith.addf %112, %113 : vector<2x64xf32>
    %115 = arith.negf %114 : vector<2x64xf32>
    %116 = math.exp %115 : vector<2x64xf32>
    %cst_28 = arith.constant 1.000000e+00 : f32
    %117 = vector.broadcast %cst_28 : f32 to vector<2x64xf32>
    %118 = arith.addf %117, %116 : vector<2x64xf32>
    %119 = arith.divf %117, %118 : vector<2x64xf32>
    %120 = vector.extract_strided_slice %119 {offsets = [0, 0], sizes = [2, 32], strides = [1, 1]} : vector<2x64xf32> to vector<2x32xf32>
    %121 = vector.extract_strided_slice %119 {offsets = [0, 32], sizes = [2, 32], strides = [1, 1]} : vector<2x64xf32> to vector<2x32xf32>
    %122 = vector.extract_strided_slice %109 {offsets = [0, 64], sizes = [2, 32], strides = [1, 1]} : vector<2x96xf32> to vector<2x32xf32>
    %123 = vector.extract_strided_slice %111 {offsets = [0, 64], sizes = [2, 32], strides = [1, 1]} : vector<2x96xf32> to vector<2x32xf32>
    %124 = vector.broadcast %42 : vector<1x32xf32> to vector<2x32xf32>
    %125 = arith.addf %123, %124 : vector<2x32xf32>
    %126 = arith.mulf %120, %125 : vector<2x32xf32>
    %127 = arith.addf %122, %126 : vector<2x32xf32>
    %128 = math.tanh %127 : vector<2x32xf32>
    %129 = arith.subf %107, %128 : vector<2x32xf32>
    %130 = arith.mulf %121, %129 : vector<2x32xf32>
    %131 = arith.addf %128, %130 : vector<2x32xf32>
    %c4 = arith.constant 4 : index
    %c0_29 = arith.constant 0 : index
    %c0_30 = arith.constant 0 : index
    %132 = vector.load %arg6[%c4, %c0_29, %c0_30] : memref<16x2x96xf32, #tpu.memory_space<vmem>>, vector<1x2x96xf32>
    %133 = vector.shape_cast %132 : vector<1x2x96xf32> to vector<2x96xf32>
    %134 = arith.truncf %131 : vector<2x32xf32> to vector<2x32xbf16>
    %cst_31 = arith.constant dense<0.000000e+00> : vector<2x96xf32>
    %135 = tpu.matmul %134, %41, %cst_31 {dimension_numbers = #tpu.dot_dimension_numbers<[1], [0], [0], [1], [0, 0, 1, 1], [], []>} : vector<2x32xbf16>, vector<32x96xbf16>, vector<2x96xf32> -> vector<2x96xf32>
    %136 = vector.extract_strided_slice %133 {offsets = [0, 0], sizes = [2, 64], strides = [1, 1]} : vector<2x96xf32> to vector<2x64xf32>
    %137 = vector.extract_strided_slice %135 {offsets = [0, 0], sizes = [2, 64], strides = [1, 1]} : vector<2x96xf32> to vector<2x64xf32>
    %138 = arith.addf %136, %137 : vector<2x64xf32>
    %139 = arith.negf %138 : vector<2x64xf32>
    %140 = math.exp %139 : vector<2x64xf32>
    %cst_32 = arith.constant 1.000000e+00 : f32
    %141 = vector.broadcast %cst_32 : f32 to vector<2x64xf32>
    %142 = arith.addf %141, %140 : vector<2x64xf32>
    %143 = arith.divf %141, %142 : vector<2x64xf32>
    %144 = vector.extract_strided_slice %143 {offsets = [0, 0], sizes = [2, 32], strides = [1, 1]} : vector<2x64xf32> to vector<2x32xf32>
    %145 = vector.extract_strided_slice %143 {offsets = [0, 32], sizes = [2, 32], strides = [1, 1]} : vector<2x64xf32> to vector<2x32xf32>
    %146 = vector.extract_strided_slice %133 {offsets = [0, 64], sizes = [2, 32], strides = [1, 1]} : vector<2x96xf32> to vector<2x32xf32>
    %147 = vector.extract_strided_slice %135 {offsets = [0, 64], sizes = [2, 32], strides = [1, 1]} : vector<2x96xf32> to vector<2x32xf32>
    %148 = vector.broadcast %42 : vector<1x32xf32> to vector<2x32xf32>
    %149 = arith.addf %147, %148 : vector<2x32xf32>
    %150 = arith.mulf %144, %149 : vector<2x32xf32>
    %151 = arith.addf %146, %150 : vector<2x32xf32>
    %152 = math.tanh %151 : vector<2x32xf32>
    %153 = arith.subf %131, %152 : vector<2x32xf32>
    %154 = arith.mulf %145, %153 : vector<2x32xf32>
    %155 = arith.addf %152, %154 : vector<2x32xf32>
    %c5 = arith.constant 5 : index
    %c0_33 = arith.constant 0 : index
    %c0_34 = arith.constant 0 : index
    %156 = vector.load %arg6[%c5, %c0_33, %c0_34] : memref<16x2x96xf32, #tpu.memory_space<vmem>>, vector<1x2x96xf32>
    %157 = vector.shape_cast %156 : vector<1x2x96xf32> to vector<2x96xf32>
    %158 = arith.truncf %155 : vector<2x32xf32> to vector<2x32xbf16>
    %cst_35 = arith.constant dense<0.000000e+00> : vector<2x96xf32>
    %159 = tpu.matmul %158, %41, %cst_35 {dimension_numbers = #tpu.dot_dimension_numbers<[1], [0], [0], [1], [0, 0, 1, 1], [], []>} : vector<2x32xbf16>, vector<32x96xbf16>, vector<2x96xf32> -> vector<2x96xf32>
    %160 = vector.extract_strided_slice %157 {offsets = [0, 0], sizes = [2, 64], strides = [1, 1]} : vector<2x96xf32> to vector<2x64xf32>
    %161 = vector.extract_strided_slice %159 {offsets = [0, 0], sizes = [2, 64], strides = [1, 1]} : vector<2x96xf32> to vector<2x64xf32>
    %162 = arith.addf %160, %161 : vector<2x64xf32>
    %163 = arith.negf %162 : vector<2x64xf32>
    %164 = math.exp %163 : vector<2x64xf32>
    %cst_36 = arith.constant 1.000000e+00 : f32
    %165 = vector.broadcast %cst_36 : f32 to vector<2x64xf32>
    %166 = arith.addf %165, %164 : vector<2x64xf32>
    %167 = arith.divf %165, %166 : vector<2x64xf32>
    %168 = vector.extract_strided_slice %167 {offsets = [0, 0], sizes = [2, 32], strides = [1, 1]} : vector<2x64xf32> to vector<2x32xf32>
    %169 = vector.extract_strided_slice %167 {offsets = [0, 32], sizes = [2, 32], strides = [1, 1]} : vector<2x64xf32> to vector<2x32xf32>
    %170 = vector.extract_strided_slice %157 {offsets = [0, 64], sizes = [2, 32], strides = [1, 1]} : vector<2x96xf32> to vector<2x32xf32>
    %171 = vector.extract_strided_slice %159 {offsets = [0, 64], sizes = [2, 32], strides = [1, 1]} : vector<2x96xf32> to vector<2x32xf32>
    %172 = vector.broadcast %42 : vector<1x32xf32> to vector<2x32xf32>
    %173 = arith.addf %171, %172 : vector<2x32xf32>
    %174 = arith.mulf %168, %173 : vector<2x32xf32>
    %175 = arith.addf %170, %174 : vector<2x32xf32>
    %176 = math.tanh %175 : vector<2x32xf32>
    %177 = arith.subf %155, %176 : vector<2x32xf32>
    %178 = arith.mulf %169, %177 : vector<2x32xf32>
    %179 = arith.addf %176, %178 : vector<2x32xf32>
    %c6 = arith.constant 6 : index
    %c0_37 = arith.constant 0 : index
    %c0_38 = arith.constant 0 : index
    %180 = vector.load %arg6[%c6, %c0_37, %c0_38] : memref<16x2x96xf32, #tpu.memory_space<vmem>>, vector<1x2x96xf32>
    %181 = vector.shape_cast %180 : vector<1x2x96xf32> to vector<2x96xf32>
    %182 = arith.truncf %179 : vector<2x32xf32> to vector<2x32xbf16>
    %cst_39 = arith.constant dense<0.000000e+00> : vector<2x96xf32>
    %183 = tpu.matmul %182, %41, %cst_39 {dimension_numbers = #tpu.dot_dimension_numbers<[1], [0], [0], [1], [0, 0, 1, 1], [], []>} : vector<2x32xbf16>, vector<32x96xbf16>, vector<2x96xf32> -> vector<2x96xf32>
    %184 = vector.extract_strided_slice %181 {offsets = [0, 0], sizes = [2, 64], strides = [1, 1]} : vector<2x96xf32> to vector<2x64xf32>
    %185 = vector.extract_strided_slice %183 {offsets = [0, 0], sizes = [2, 64], strides = [1, 1]} : vector<2x96xf32> to vector<2x64xf32>
    %186 = arith.addf %184, %185 : vector<2x64xf32>
    %187 = arith.negf %186 : vector<2x64xf32>
    %188 = math.exp %187 : vector<2x64xf32>
    %cst_40 = arith.constant 1.000000e+00 : f32
    %189 = vector.broadcast %cst_40 : f32 to vector<2x64xf32>
    %190 = arith.addf %189, %188 : vector<2x64xf32>
    %191 = arith.divf %189, %190 : vector<2x64xf32>
    %192 = vector.extract_strided_slice %191 {offsets = [0, 0], sizes = [2, 32], strides = [1, 1]} : vector<2x64xf32> to vector<2x32xf32>
    %193 = vector.extract_strided_slice %191 {offsets = [0, 32], sizes = [2, 32], strides = [1, 1]} : vector<2x64xf32> to vector<2x32xf32>
    %194 = vector.extract_strided_slice %181 {offsets = [0, 64], sizes = [2, 32], strides = [1, 1]} : vector<2x96xf32> to vector<2x32xf32>
    %195 = vector.extract_strided_slice %183 {offsets = [0, 64], sizes = [2, 32], strides = [1, 1]} : vector<2x96xf32> to vector<2x32xf32>
    %196 = vector.broadcast %42 : vector<1x32xf32> to vector<2x32xf32>
    %197 = arith.addf %195, %196 : vector<2x32xf32>
    %198 = arith.mulf %192, %197 : vector<2x32xf32>
    %199 = arith.addf %194, %198 : vector<2x32xf32>
    %200 = math.tanh %199 : vector<2x32xf32>
    %201 = arith.subf %179, %200 : vector<2x32xf32>
    %202 = arith.mulf %193, %201 : vector<2x32xf32>
    %203 = arith.addf %200, %202 : vector<2x32xf32>
    %c7 = arith.constant 7 : index
    %c0_41 = arith.constant 0 : index
    %c0_42 = arith.constant 0 : index
    %204 = vector.load %arg6[%c7, %c0_41, %c0_42] : memref<16x2x96xf32, #tpu.memory_space<vmem>>, vector<1x2x96xf32>
    %205 = vector.shape_cast %204 : vector<1x2x96xf32> to vector<2x96xf32>
    %206 = arith.truncf %203 : vector<2x32xf32> to vector<2x32xbf16>
    %cst_43 = arith.constant dense<0.000000e+00> : vector<2x96xf32>
    %207 = tpu.matmul %206, %41, %cst_43 {dimension_numbers = #tpu.dot_dimension_numbers<[1], [0], [0], [1], [0, 0, 1, 1], [], []>} : vector<2x32xbf16>, vector<32x96xbf16>, vector<2x96xf32> -> vector<2x96xf32>
    %208 = vector.extract_strided_slice %205 {offsets = [0, 0], sizes = [2, 64], strides = [1, 1]} : vector<2x96xf32> to vector<2x64xf32>
    %209 = vector.extract_strided_slice %207 {offsets = [0, 0], sizes = [2, 64], strides = [1, 1]} : vector<2x96xf32> to vector<2x64xf32>
    %210 = arith.addf %208, %209 : vector<2x64xf32>
    %211 = arith.negf %210 : vector<2x64xf32>
    %212 = math.exp %211 : vector<2x64xf32>
    %cst_44 = arith.constant 1.000000e+00 : f32
    %213 = vector.broadcast %cst_44 : f32 to vector<2x64xf32>
    %214 = arith.addf %213, %212 : vector<2x64xf32>
    %215 = arith.divf %213, %214 : vector<2x64xf32>
    %216 = vector.extract_strided_slice %215 {offsets = [0, 0], sizes = [2, 32], strides = [1, 1]} : vector<2x64xf32> to vector<2x32xf32>
    %217 = vector.extract_strided_slice %215 {offsets = [0, 32], sizes = [2, 32], strides = [1, 1]} : vector<2x64xf32> to vector<2x32xf32>
    %218 = vector.extract_strided_slice %205 {offsets = [0, 64], sizes = [2, 32], strides = [1, 1]} : vector<2x96xf32> to vector<2x32xf32>
    %219 = vector.extract_strided_slice %207 {offsets = [0, 64], sizes = [2, 32], strides = [1, 1]} : vector<2x96xf32> to vector<2x32xf32>
    %220 = vector.broadcast %42 : vector<1x32xf32> to vector<2x32xf32>
    %221 = arith.addf %219, %220 : vector<2x32xf32>
    %222 = arith.mulf %216, %221 : vector<2x32xf32>
    %223 = arith.addf %218, %222 : vector<2x32xf32>
    %224 = math.tanh %223 : vector<2x32xf32>
    %225 = arith.subf %203, %224 : vector<2x32xf32>
    %226 = arith.mulf %217, %225 : vector<2x32xf32>
    %227 = arith.addf %224, %226 : vector<2x32xf32>
    %c8 = arith.constant 8 : index
    %c0_45 = arith.constant 0 : index
    %c0_46 = arith.constant 0 : index
    %228 = vector.load %arg6[%c8, %c0_45, %c0_46] : memref<16x2x96xf32, #tpu.memory_space<vmem>>, vector<1x2x96xf32>
    %229 = vector.shape_cast %228 : vector<1x2x96xf32> to vector<2x96xf32>
    %230 = arith.truncf %227 : vector<2x32xf32> to vector<2x32xbf16>
    %cst_47 = arith.constant dense<0.000000e+00> : vector<2x96xf32>
    %231 = tpu.matmul %230, %41, %cst_47 {dimension_numbers = #tpu.dot_dimension_numbers<[1], [0], [0], [1], [0, 0, 1, 1], [], []>} : vector<2x32xbf16>, vector<32x96xbf16>, vector<2x96xf32> -> vector<2x96xf32>
    %232 = vector.extract_strided_slice %229 {offsets = [0, 0], sizes = [2, 64], strides = [1, 1]} : vector<2x96xf32> to vector<2x64xf32>
    %233 = vector.extract_strided_slice %231 {offsets = [0, 0], sizes = [2, 64], strides = [1, 1]} : vector<2x96xf32> to vector<2x64xf32>
    %234 = arith.addf %232, %233 : vector<2x64xf32>
    %235 = arith.negf %234 : vector<2x64xf32>
    %236 = math.exp %235 : vector<2x64xf32>
    %cst_48 = arith.constant 1.000000e+00 : f32
    %237 = vector.broadcast %cst_48 : f32 to vector<2x64xf32>
    %238 = arith.addf %237, %236 : vector<2x64xf32>
    %239 = arith.divf %237, %238 : vector<2x64xf32>
    %240 = vector.extract_strided_slice %239 {offsets = [0, 0], sizes = [2, 32], strides = [1, 1]} : vector<2x64xf32> to vector<2x32xf32>
    %241 = vector.extract_strided_slice %239 {offsets = [0, 32], sizes = [2, 32], strides = [1, 1]} : vector<2x64xf32> to vector<2x32xf32>
    %242 = vector.extract_strided_slice %229 {offsets = [0, 64], sizes = [2, 32], strides = [1, 1]} : vector<2x96xf32> to vector<2x32xf32>
    %243 = vector.extract_strided_slice %231 {offsets = [0, 64], sizes = [2, 32], strides = [1, 1]} : vector<2x96xf32> to vector<2x32xf32>
    %244 = vector.broadcast %42 : vector<1x32xf32> to vector<2x32xf32>
    %245 = arith.addf %243, %244 : vector<2x32xf32>
    %246 = arith.mulf %240, %245 : vector<2x32xf32>
    %247 = arith.addf %242, %246 : vector<2x32xf32>
    %248 = math.tanh %247 : vector<2x32xf32>
    %249 = arith.subf %227, %248 : vector<2x32xf32>
    %250 = arith.mulf %241, %249 : vector<2x32xf32>
    %251 = arith.addf %248, %250 : vector<2x32xf32>
    %c9 = arith.constant 9 : index
    %c0_49 = arith.constant 0 : index
    %c0_50 = arith.constant 0 : index
    %252 = vector.load %arg6[%c9, %c0_49, %c0_50] : memref<16x2x96xf32, #tpu.memory_space<vmem>>, vector<1x2x96xf32>
    %253 = vector.shape_cast %252 : vector<1x2x96xf32> to vector<2x96xf32>
    %254 = arith.truncf %251 : vector<2x32xf32> to vector<2x32xbf16>
    %cst_51 = arith.constant dense<0.000000e+00> : vector<2x96xf32>
    %255 = tpu.matmul %254, %41, %cst_51 {dimension_numbers = #tpu.dot_dimension_numbers<[1], [0], [0], [1], [0, 0, 1, 1], [], []>} : vector<2x32xbf16>, vector<32x96xbf16>, vector<2x96xf32> -> vector<2x96xf32>
    %256 = vector.extract_strided_slice %253 {offsets = [0, 0], sizes = [2, 64], strides = [1, 1]} : vector<2x96xf32> to vector<2x64xf32>
    %257 = vector.extract_strided_slice %255 {offsets = [0, 0], sizes = [2, 64], strides = [1, 1]} : vector<2x96xf32> to vector<2x64xf32>
    %258 = arith.addf %256, %257 : vector<2x64xf32>
    %259 = arith.negf %258 : vector<2x64xf32>
    %260 = math.exp %259 : vector<2x64xf32>
    %cst_52 = arith.constant 1.000000e+00 : f32
    %261 = vector.broadcast %cst_52 : f32 to vector<2x64xf32>
    %262 = arith.addf %261, %260 : vector<2x64xf32>
    %263 = arith.divf %261, %262 : vector<2x64xf32>
    %264 = vector.extract_strided_slice %263 {offsets = [0, 0], sizes = [2, 32], strides = [1, 1]} : vector<2x64xf32> to vector<2x32xf32>
    %265 = vector.extract_strided_slice %263 {offsets = [0, 32], sizes = [2, 32], strides = [1, 1]} : vector<2x64xf32> to vector<2x32xf32>
    %266 = vector.extract_strided_slice %253 {offsets = [0, 64], sizes = [2, 32], strides = [1, 1]} : vector<2x96xf32> to vector<2x32xf32>
    %267 = vector.extract_strided_slice %255 {offsets = [0, 64], sizes = [2, 32], strides = [1, 1]} : vector<2x96xf32> to vector<2x32xf32>
    %268 = vector.broadcast %42 : vector<1x32xf32> to vector<2x32xf32>
    %269 = arith.addf %267, %268 : vector<2x32xf32>
    %270 = arith.mulf %264, %269 : vector<2x32xf32>
    %271 = arith.addf %266, %270 : vector<2x32xf32>
    %272 = math.tanh %271 : vector<2x32xf32>
    %273 = arith.subf %251, %272 : vector<2x32xf32>
    %274 = arith.mulf %265, %273 : vector<2x32xf32>
    %275 = arith.addf %272, %274 : vector<2x32xf32>
    %c10 = arith.constant 10 : index
    %c0_53 = arith.constant 0 : index
    %c0_54 = arith.constant 0 : index
    %276 = vector.load %arg6[%c10, %c0_53, %c0_54] : memref<16x2x96xf32, #tpu.memory_space<vmem>>, vector<1x2x96xf32>
    %277 = vector.shape_cast %276 : vector<1x2x96xf32> to vector<2x96xf32>
    %278 = arith.truncf %275 : vector<2x32xf32> to vector<2x32xbf16>
    %cst_55 = arith.constant dense<0.000000e+00> : vector<2x96xf32>
    %279 = tpu.matmul %278, %41, %cst_55 {dimension_numbers = #tpu.dot_dimension_numbers<[1], [0], [0], [1], [0, 0, 1, 1], [], []>} : vector<2x32xbf16>, vector<32x96xbf16>, vector<2x96xf32> -> vector<2x96xf32>
    %280 = vector.extract_strided_slice %277 {offsets = [0, 0], sizes = [2, 64], strides = [1, 1]} : vector<2x96xf32> to vector<2x64xf32>
    %281 = vector.extract_strided_slice %279 {offsets = [0, 0], sizes = [2, 64], strides = [1, 1]} : vector<2x96xf32> to vector<2x64xf32>
    %282 = arith.addf %280, %281 : vector<2x64xf32>
    %283 = arith.negf %282 : vector<2x64xf32>
    %284 = math.exp %283 : vector<2x64xf32>
    %cst_56 = arith.constant 1.000000e+00 : f32
    %285 = vector.broadcast %cst_56 : f32 to vector<2x64xf32>
    %286 = arith.addf %285, %284 : vector<2x64xf32>
    %287 = arith.divf %285, %286 : vector<2x64xf32>
    %288 = vector.extract_strided_slice %287 {offsets = [0, 0], sizes = [2, 32], strides = [1, 1]} : vector<2x64xf32> to vector<2x32xf32>
    %289 = vector.extract_strided_slice %287 {offsets = [0, 32], sizes = [2, 32], strides = [1, 1]} : vector<2x64xf32> to vector<2x32xf32>
    %290 = vector.extract_strided_slice %277 {offsets = [0, 64], sizes = [2, 32], strides = [1, 1]} : vector<2x96xf32> to vector<2x32xf32>
    %291 = vector.extract_strided_slice %279 {offsets = [0, 64], sizes = [2, 32], strides = [1, 1]} : vector<2x96xf32> to vector<2x32xf32>
    %292 = vector.broadcast %42 : vector<1x32xf32> to vector<2x32xf32>
    %293 = arith.addf %291, %292 : vector<2x32xf32>
    %294 = arith.mulf %288, %293 : vector<2x32xf32>
    %295 = arith.addf %290, %294 : vector<2x32xf32>
    %296 = math.tanh %295 : vector<2x32xf32>
    %297 = arith.subf %275, %296 : vector<2x32xf32>
    %298 = arith.mulf %289, %297 : vector<2x32xf32>
    %299 = arith.addf %296, %298 : vector<2x32xf32>
    %c11 = arith.constant 11 : index
    %c0_57 = arith.constant 0 : index
    %c0_58 = arith.constant 0 : index
    %300 = vector.load %arg6[%c11, %c0_57, %c0_58] : memref<16x2x96xf32, #tpu.memory_space<vmem>>, vector<1x2x96xf32>
    %301 = vector.shape_cast %300 : vector<1x2x96xf32> to vector<2x96xf32>
    %302 = arith.truncf %299 : vector<2x32xf32> to vector<2x32xbf16>
    %cst_59 = arith.constant dense<0.000000e+00> : vector<2x96xf32>
    %303 = tpu.matmul %302, %41, %cst_59 {dimension_numbers = #tpu.dot_dimension_numbers<[1], [0], [0], [1], [0, 0, 1, 1], [], []>} : vector<2x32xbf16>, vector<32x96xbf16>, vector<2x96xf32> -> vector<2x96xf32>
    %304 = vector.extract_strided_slice %301 {offsets = [0, 0], sizes = [2, 64], strides = [1, 1]} : vector<2x96xf32> to vector<2x64xf32>
    %305 = vector.extract_strided_slice %303 {offsets = [0, 0], sizes = [2, 64], strides = [1, 1]} : vector<2x96xf32> to vector<2x64xf32>
    %306 = arith.addf %304, %305 : vector<2x64xf32>
    %307 = arith.negf %306 : vector<2x64xf32>
    %308 = math.exp %307 : vector<2x64xf32>
    %cst_60 = arith.constant 1.000000e+00 : f32
    %309 = vector.broadcast %cst_60 : f32 to vector<2x64xf32>
    %310 = arith.addf %309, %308 : vector<2x64xf32>
    %311 = arith.divf %309, %310 : vector<2x64xf32>
    %312 = vector.extract_strided_slice %311 {offsets = [0, 0], sizes = [2, 32], strides = [1, 1]} : vector<2x64xf32> to vector<2x32xf32>
    %313 = vector.extract_strided_slice %311 {offsets = [0, 32], sizes = [2, 32], strides = [1, 1]} : vector<2x64xf32> to vector<2x32xf32>
    %314 = vector.extract_strided_slice %301 {offsets = [0, 64], sizes = [2, 32], strides = [1, 1]} : vector<2x96xf32> to vector<2x32xf32>
    %315 = vector.extract_strided_slice %303 {offsets = [0, 64], sizes = [2, 32], strides = [1, 1]} : vector<2x96xf32> to vector<2x32xf32>
    %316 = vector.broadcast %42 : vector<1x32xf32> to vector<2x32xf32>
    %317 = arith.addf %315, %316 : vector<2x32xf32>
    %318 = arith.mulf %312, %317 : vector<2x32xf32>
    %319 = arith.addf %314, %318 : vector<2x32xf32>
    %320 = math.tanh %319 : vector<2x32xf32>
    %321 = arith.subf %299, %320 : vector<2x32xf32>
    %322 = arith.mulf %313, %321 : vector<2x32xf32>
    %323 = arith.addf %320, %322 : vector<2x32xf32>
    %c12 = arith.constant 12 : index
    %c0_61 = arith.constant 0 : index
    %c0_62 = arith.constant 0 : index
    %324 = vector.load %arg6[%c12, %c0_61, %c0_62] : memref<16x2x96xf32, #tpu.memory_space<vmem>>, vector<1x2x96xf32>
    %325 = vector.shape_cast %324 : vector<1x2x96xf32> to vector<2x96xf32>
    %326 = arith.truncf %323 : vector<2x32xf32> to vector<2x32xbf16>
    %cst_63 = arith.constant dense<0.000000e+00> : vector<2x96xf32>
    %327 = tpu.matmul %326, %41, %cst_63 {dimension_numbers = #tpu.dot_dimension_numbers<[1], [0], [0], [1], [0, 0, 1, 1], [], []>} : vector<2x32xbf16>, vector<32x96xbf16>, vector<2x96xf32> -> vector<2x96xf32>
    %328 = vector.extract_strided_slice %325 {offsets = [0, 0], sizes = [2, 64], strides = [1, 1]} : vector<2x96xf32> to vector<2x64xf32>
    %329 = vector.extract_strided_slice %327 {offsets = [0, 0], sizes = [2, 64], strides = [1, 1]} : vector<2x96xf32> to vector<2x64xf32>
    %330 = arith.addf %328, %329 : vector<2x64xf32>
    %331 = arith.negf %330 : vector<2x64xf32>
    %332 = math.exp %331 : vector<2x64xf32>
    %cst_64 = arith.constant 1.000000e+00 : f32
    %333 = vector.broadcast %cst_64 : f32 to vector<2x64xf32>
    %334 = arith.addf %333, %332 : vector<2x64xf32>
    %335 = arith.divf %333, %334 : vector<2x64xf32>
    %336 = vector.extract_strided_slice %335 {offsets = [0, 0], sizes = [2, 32], strides = [1, 1]} : vector<2x64xf32> to vector<2x32xf32>
    %337 = vector.extract_strided_slice %335 {offsets = [0, 32], sizes = [2, 32], strides = [1, 1]} : vector<2x64xf32> to vector<2x32xf32>
    %338 = vector.extract_strided_slice %325 {offsets = [0, 64], sizes = [2, 32], strides = [1, 1]} : vector<2x96xf32> to vector<2x32xf32>
    %339 = vector.extract_strided_slice %327 {offsets = [0, 64], sizes = [2, 32], strides = [1, 1]} : vector<2x96xf32> to vector<2x32xf32>
    %340 = vector.broadcast %42 : vector<1x32xf32> to vector<2x32xf32>
    %341 = arith.addf %339, %340 : vector<2x32xf32>
    %342 = arith.mulf %336, %341 : vector<2x32xf32>
    %343 = arith.addf %338, %342 : vector<2x32xf32>
    %344 = math.tanh %343 : vector<2x32xf32>
    %345 = arith.subf %323, %344 : vector<2x32xf32>
    %346 = arith.mulf %337, %345 : vector<2x32xf32>
    %347 = arith.addf %344, %346 : vector<2x32xf32>
    %c13 = arith.constant 13 : index
    %c0_65 = arith.constant 0 : index
    %c0_66 = arith.constant 0 : index
    %348 = vector.load %arg6[%c13, %c0_65, %c0_66] : memref<16x2x96xf32, #tpu.memory_space<vmem>>, vector<1x2x96xf32>
    %349 = vector.shape_cast %348 : vector<1x2x96xf32> to vector<2x96xf32>
    %350 = arith.truncf %347 : vector<2x32xf32> to vector<2x32xbf16>
    %cst_67 = arith.constant dense<0.000000e+00> : vector<2x96xf32>
    %351 = tpu.matmul %350, %41, %cst_67 {dimension_numbers = #tpu.dot_dimension_numbers<[1], [0], [0], [1], [0, 0, 1, 1], [], []>} : vector<2x32xbf16>, vector<32x96xbf16>, vector<2x96xf32> -> vector<2x96xf32>
    %352 = vector.extract_strided_slice %349 {offsets = [0, 0], sizes = [2, 64], strides = [1, 1]} : vector<2x96xf32> to vector<2x64xf32>
    %353 = vector.extract_strided_slice %351 {offsets = [0, 0], sizes = [2, 64], strides = [1, 1]} : vector<2x96xf32> to vector<2x64xf32>
    %354 = arith.addf %352, %353 : vector<2x64xf32>
    %355 = arith.negf %354 : vector<2x64xf32>
    %356 = math.exp %355 : vector<2x64xf32>
    %cst_68 = arith.constant 1.000000e+00 : f32
    %357 = vector.broadcast %cst_68 : f32 to vector<2x64xf32>
    %358 = arith.addf %357, %356 : vector<2x64xf32>
    %359 = arith.divf %357, %358 : vector<2x64xf32>
    %360 = vector.extract_strided_slice %359 {offsets = [0, 0], sizes = [2, 32], strides = [1, 1]} : vector<2x64xf32> to vector<2x32xf32>
    %361 = vector.extract_strided_slice %359 {offsets = [0, 32], sizes = [2, 32], strides = [1, 1]} : vector<2x64xf32> to vector<2x32xf32>
    %362 = vector.extract_strided_slice %349 {offsets = [0, 64], sizes = [2, 32], strides = [1, 1]} : vector<2x96xf32> to vector<2x32xf32>
    %363 = vector.extract_strided_slice %351 {offsets = [0, 64], sizes = [2, 32], strides = [1, 1]} : vector<2x96xf32> to vector<2x32xf32>
    %364 = vector.broadcast %42 : vector<1x32xf32> to vector<2x32xf32>
    %365 = arith.addf %363, %364 : vector<2x32xf32>
    %366 = arith.mulf %360, %365 : vector<2x32xf32>
    %367 = arith.addf %362, %366 : vector<2x32xf32>
    %368 = math.tanh %367 : vector<2x32xf32>
    %369 = arith.subf %347, %368 : vector<2x32xf32>
    %370 = arith.mulf %361, %369 : vector<2x32xf32>
    %371 = arith.addf %368, %370 : vector<2x32xf32>
    %c14 = arith.constant 14 : index
    %c0_69 = arith.constant 0 : index
    %c0_70 = arith.constant 0 : index
    %372 = vector.load %arg6[%c14, %c0_69, %c0_70] : memref<16x2x96xf32, #tpu.memory_space<vmem>>, vector<1x2x96xf32>
    %373 = vector.shape_cast %372 : vector<1x2x96xf32> to vector<2x96xf32>
    %374 = arith.truncf %371 : vector<2x32xf32> to vector<2x32xbf16>
    %cst_71 = arith.constant dense<0.000000e+00> : vector<2x96xf32>
    %375 = tpu.matmul %374, %41, %cst_71 {dimension_numbers = #tpu.dot_dimension_numbers<[1], [0], [0], [1], [0, 0, 1, 1], [], []>} : vector<2x32xbf16>, vector<32x96xbf16>, vector<2x96xf32> -> vector<2x96xf32>
    %376 = vector.extract_strided_slice %373 {offsets = [0, 0], sizes = [2, 64], strides = [1, 1]} : vector<2x96xf32> to vector<2x64xf32>
    %377 = vector.extract_strided_slice %375 {offsets = [0, 0], sizes = [2, 64], strides = [1, 1]} : vector<2x96xf32> to vector<2x64xf32>
    %378 = arith.addf %376, %377 : vector<2x64xf32>
    %379 = arith.negf %378 : vector<2x64xf32>
    %380 = math.exp %379 : vector<2x64xf32>
    %cst_72 = arith.constant 1.000000e+00 : f32
    %381 = vector.broadcast %cst_72 : f32 to vector<2x64xf32>
    %382 = arith.addf %381, %380 : vector<2x64xf32>
    %383 = arith.divf %381, %382 : vector<2x64xf32>
    %384 = vector.extract_strided_slice %383 {offsets = [0, 0], sizes = [2, 32], strides = [1, 1]} : vector<2x64xf32> to vector<2x32xf32>
    %385 = vector.extract_strided_slice %383 {offsets = [0, 32], sizes = [2, 32], strides = [1, 1]} : vector<2x64xf32> to vector<2x32xf32>
    %386 = vector.extract_strided_slice %373 {offsets = [0, 64], sizes = [2, 32], strides = [1, 1]} : vector<2x96xf32> to vector<2x32xf32>
    %387 = vector.extract_strided_slice %375 {offsets = [0, 64], sizes = [2, 32], strides = [1, 1]} : vector<2x96xf32> to vector<2x32xf32>
    %388 = vector.broadcast %42 : vector<1x32xf32> to vector<2x32xf32>
    %389 = arith.addf %387, %388 : vector<2x32xf32>
    %390 = arith.mulf %384, %389 : vector<2x32xf32>
    %391 = arith.addf %386, %390 : vector<2x32xf32>
    %392 = math.tanh %391 : vector<2x32xf32>
    %393 = arith.subf %371, %392 : vector<2x32xf32>
    %394 = arith.mulf %385, %393 : vector<2x32xf32>
    %395 = arith.addf %392, %394 : vector<2x32xf32>
    %c15 = arith.constant 15 : index
    %c0_73 = arith.constant 0 : index
    %c0_74 = arith.constant 0 : index
    %396 = vector.load %arg6[%c15, %c0_73, %c0_74] : memref<16x2x96xf32, #tpu.memory_space<vmem>>, vector<1x2x96xf32>
    %397 = vector.shape_cast %396 : vector<1x2x96xf32> to vector<2x96xf32>
    %398 = arith.truncf %395 : vector<2x32xf32> to vector<2x32xbf16>
    %cst_75 = arith.constant dense<0.000000e+00> : vector<2x96xf32>
    %399 = tpu.matmul %398, %41, %cst_75 {dimension_numbers = #tpu.dot_dimension_numbers<[1], [0], [0], [1], [0, 0, 1, 1], [], []>} : vector<2x32xbf16>, vector<32x96xbf16>, vector<2x96xf32> -> vector<2x96xf32>
    %400 = vector.extract_strided_slice %397 {offsets = [0, 0], sizes = [2, 64], strides = [1, 1]} : vector<2x96xf32> to vector<2x64xf32>
    %401 = vector.extract_strided_slice %399 {offsets = [0, 0], sizes = [2, 64], strides = [1, 1]} : vector<2x96xf32> to vector<2x64xf32>
    %402 = arith.addf %400, %401 : vector<2x64xf32>
    %403 = arith.negf %402 : vector<2x64xf32>
    %404 = math.exp %403 : vector<2x64xf32>
    %cst_76 = arith.constant 1.000000e+00 : f32
    %405 = vector.broadcast %cst_76 : f32 to vector<2x64xf32>
    %406 = arith.addf %405, %404 : vector<2x64xf32>
    %407 = arith.divf %405, %406 : vector<2x64xf32>
    %408 = vector.extract_strided_slice %407 {offsets = [0, 0], sizes = [2, 32], strides = [1, 1]} : vector<2x64xf32> to vector<2x32xf32>
    %409 = vector.extract_strided_slice %407 {offsets = [0, 32], sizes = [2, 32], strides = [1, 1]} : vector<2x64xf32> to vector<2x32xf32>
    %410 = vector.extract_strided_slice %397 {offsets = [0, 64], sizes = [2, 32], strides = [1, 1]} : vector<2x96xf32> to vector<2x32xf32>
    %411 = vector.extract_strided_slice %399 {offsets = [0, 64], sizes = [2, 32], strides = [1, 1]} : vector<2x96xf32> to vector<2x32xf32>
    %412 = vector.broadcast %42 : vector<1x32xf32> to vector<2x32xf32>
    %413 = arith.addf %411, %412 : vector<2x32xf32>
    %414 = arith.mulf %408, %413 : vector<2x32xf32>
    %415 = arith.addf %410, %414 : vector<2x32xf32>
    %416 = math.tanh %415 : vector<2x32xf32>
    %417 = arith.subf %395, %416 : vector<2x32xf32>
    %418 = arith.mulf %409, %417 : vector<2x32xf32>
    %419 = arith.addf %416, %418 : vector<2x32xf32>
    %420 = vector.extract_strided_slice %0 {offsets = [6, 0], sizes = [1, 4], strides = [1, 1]} : vector<8x128xf32> to vector<1x4xf32>
    %c0_77 = arith.constant 0 : index
    %c0_78 = arith.constant 0 : index
    %421 = vector.load %arg4[%c0_77, %c0_78] : memref<32x4xf32, #tpu.memory_space<vmem>>, vector<32x4xf32>
    %cst_79 = arith.constant dense<0.000000e+00> : vector<2x4xf32>
    %422 = tpu.matmul %419, %421, %cst_79 {dimension_numbers = #tpu.dot_dimension_numbers<[1], [0], [0], [1], [0, 0, 1, 1], [], []>} : vector<2x32xf32>, vector<32x4xf32>, vector<2x4xf32> -> vector<2x4xf32>
    %423 = vector.broadcast %420 : vector<1x4xf32> to vector<2x4xf32>
    %424 = arith.addf %422, %423 : vector<2x4xf32>
    %c0_80 = arith.constant 0 : index
    %c0_81 = arith.constant 0 : index
    %425 = vector.load %arg5[%c0_80, %c0_81] : memref<2x4xf32, #tpu.memory_space<vmem>>, vector<2x4xf32>
    tpu.vector_store %arg5[%c0_80, %c0_81], %424 {strides = array<i32>} : memref<2x4xf32, #tpu.memory_space<vmem>>, vector<2x4xf32>,
    return
  }
}

</mosaic_0001>

<llo_original>
// kernel: tpu_custom_call.1
$region0: #{tpu_custom_call.1}
  #allocation0 [shape = 'u32[]', space=smem, size = 0x4, offset = 0x4, fixed_abs, tag = 'smem constant byte address 0x4 - core index']
  #allocation1 [shape = 'u32[144,128]{1,0:T(1,128)}', space=vmem, size = 0x12000, scoped, tag = 'internal scratch']
  #allocation2 [shape = 'f32[16,2,96]{2,1,0:T(2,128)}', space=vmem, size = 0x4000, scoped, tag = 'scratch operand']
  %s0 = inlined_call_operand.vmem [shape: f32[16,2], index: 0, kind: input, shape index: {}]
  %s1 = inlined_call_operand.vmem [shape: bf16[16,96], index: 1, kind: input, shape index: {}]
  %s2 = inlined_call_operand.vmem [shape: bf16[32,96], index: 2, kind: input, shape index: {}]
  %s3 = inlined_call_operand.vmem [shape: f32[8,128], index: 3, kind: input, shape index: {}]
  %s4 = inlined_call_operand.vmem [shape: f32[32,4], index: 4, kind: input, shape index: {}]
  %s5 = inlined_call_operand.hbm [shape: f32[2,4], index: 5, kind: output, shape index: {}]
  %s6 = sld [smem:[#allocation0]]
  $region30: #{tpu_custom_call.1} parent=0
    _
  %s8 = ssub.s32 1, %s6
  %s9 = scalar_select 0, %s8, %s6
  $region1: #{tpu_custom_call.1} parent=0
    #allocation3 [shape = 'u8[1024]{0}', space=vmem, size = 0x400, scoped, tag = 'output window, operand 0, single buffered']
    #allocation4 [shape = 's32[1]{0}', space=sflag, size = 0x4, scoped, tag = 'scoped memory for tpu_custom_call.1']
    %10 = vsyncpa [#allocation4], 0
    // Predicated region
    $region2: #{tpu_custom_call.1} parent=1 // pred_check
      _
    $region3: #{tpu_custom_call.1} parent=1 // pred_check_branch
      %12 = sbr.rel (0) target = $region5
    $region4: #{tpu_custom_call.1} parent=1 // pred_region
      _
    $region5: #{tpu_custom_call.1} parent=1 // pred_fallthru
      _
    // Predicated region
    $region6: #{tpu_custom_call.1} parent=1 // pred_check
      _
    $region7: #{tpu_custom_call.1} parent=1 // pred_check_branch
      %14 = sbr.rel (0) target = $region9
    $region8: #{tpu_custom_call.1} parent=1 // pred_region
      _
    $region9: #{tpu_custom_call.1} parent=1 // pred_fallthru
      _
    // Predicated region
    $region10: #{tpu_custom_call.1} parent=1 // pred_check
      _
    $region11: #{tpu_custom_call.1} parent=1 // pred_check_branch
      %16 = sbr.rel (0) target = $region13
    $region12: #{tpu_custom_call.1} parent=1 // pred_region
      _
    $region13: #{tpu_custom_call.1} parent=1 // pred_fallthru
      _
    // Predicated region
    $region14: #{tpu_custom_call.1} parent=1 // pred_check
      _
    $region15: #{tpu_custom_call.1} parent=1 // pred_check_branch
      %18 = sbr.rel (0) target = $region17
    $region16: #{tpu_custom_call.1} parent=1 // pred_region
      _
    $region17: #{tpu_custom_call.1} parent=1 // pred_fallthru
      _
    // Predicated region
    $region18: #{tpu_custom_call.1} parent=1 // pred_check
      _
    $region19: #{tpu_custom_call.1} parent=1 // pred_check_branch
      %20 = sbr.rel (0) target = $region21
    $region20: #{tpu_custom_call.1} parent=1 // pred_region
      _
    $region21: #{tpu_custom_call.1} parent=1 // pred_fallthru
      _
    %v22 = vld [vmem:[%s3] sm:$0xff]
    %v23 = vld [vmem:[%s0] sm:$0xff]
    %v24 = vld [vmem:[%s0 + $0x8] sm:$0xff]
    %vm27 = vcmask 1040384
    %v28 = vrot.slane %v23, 7
    %v29 = vrot.slane %v24, 7
    %v30 = vsel %vm27, %v28, %v29
    %v34 = vsel %vm27, 0.0, %v28
    %v35 = vsel %vm27, %v29, 0.0
    %v36 = vlaneseq
    %v37 = vshrl.u32 %v36, 7
    %v38 = vsub.s32 0, %v37
    %v39 = vrot.slane %v34, %v38
    %41 = vbcast.lane.b32.xlu0 %v39, 256
    %v42 = vpop.permute.xlu0 %41
    %v43 = vlaneseq
    %v44 = vshrl.u32 %v43, 7
    %v45 = vsub.s32 1, %v44
    %v46 = vrot.slane %v34, %v45
    %48 = vbcast.lane.b32.xlu0 %v46, 256
    %v49 = vpop.permute.xlu0 %48
    %v50 = vlaneseq
    %v51 = vshrl.u32 %v50, 7
    %v52 = vsub.s32 2, %v51
    %v53 = vrot.slane %v34, %v52
    %55 = vbcast.lane.b32.xlu0 %v53, 256
    %v56 = vpop.permute.xlu0 %55
    %v57 = vlaneseq
    %v58 = vshrl.u32 %v57, 7
    %v59 = vsub.s32 3, %v58
    %v60 = vrot.slane %v34, %v59
    %62 = vbcast.lane.b32.xlu0 %v60, 256
    %v63 = vpop.permute.xlu0 %62
    %v64 = vlaneseq
    %v65 = vshrl.u32 %v64, 7
    %v66 = vsub.s32 4, %v65
    %v67 = vrot.slane %v34, %v66
    %69 = vbcast.lane.b32.xlu0 %v67, 256
    %v70 = vpop.permute.xlu0 %69
    %v71 = vlaneseq
    %v72 = vshrl.u32 %v71, 7
    %v73 = vsub.s32 5, %v72
    %v74 = vrot.slane %v34, %v73
    %76 = vbcast.lane.b32.xlu0 %v74, 256
    %v77 = vpop.permute.xlu0 %76
    %v78 = vlaneseq
    %v79 = vshrl.u32 %v78, 7
    %v80 = vsub.s32 6, %v79
    %v81 = vrot.slane %v34, %v80
    %83 = vbcast.lane.b32.xlu0 %v81, 256
    %v84 = vpop.permute.xlu0 %83
    %v85 = vlaneseq
    %v86 = vshrl.u32 %v85, 7
    %v87 = vsub.s32 7, %v86
    %v88 = vrot.slane %v34, %v87
    %90 = vbcast.lane.b32.xlu0 %v88, 256
    %v91 = vpop.permute.xlu0 %90
    %v92 = vlaneseq
    %v93 = vshrl.u32 %v92, 7
    %v94 = vsub.s32 0, %v93
    %v95 = vrot.slane %v30, %v94
    %97 = vbcast.lane.b32.xlu0 %v95, 256
    %v98 = vpop.permute.xlu0 %97
    %v99 = vlaneseq
    %v100 = vshrl.u32 %v99, 7
    %v101 = vsub.s32 1, %v100
    %v102 = vrot.slane %v30, %v101
    %104 = vbcast.lane.b32.xlu0 %v102, 256
    %v105 = vpop.permute.xlu0 %104
    %v106 = vlaneseq
    %v107 = vshrl.u32 %v106, 7
    %v108 = vsub.s32 2, %v107
    %v109 = vrot.slane %v30, %v108
    %111 = vbcast.lane.b32.xlu0 %v109, 256
    %v112 = vpop.permute.xlu0 %111
    %v113 = vlaneseq
    %v114 = vshrl.u32 %v113, 7
    %v115 = vsub.s32 3, %v114
    %v116 = vrot.slane %v30, %v115
    %118 = vbcast.lane.b32.xlu0 %v116, 256
    %v119 = vpop.permute.xlu0 %118
    %v120 = vlaneseq
    %v121 = vshrl.u32 %v120, 7
    %v122 = vsub.s32 4, %v121
    %v123 = vrot.slane %v30, %v122
    %125 = vbcast.lane.b32.xlu0 %v123, 256
    %v126 = vpop.permute.xlu0 %125
    %v127 = vlaneseq
    %v128 = vshrl.u32 %v127, 7
    %v129 = vsub.s32 5, %v128
    %v130 = vrot.slane %v30, %v129
    %132 = vbcast.lane.b32.xlu0 %v130, 256
    %v133 = vpop.permute.xlu0 %132
    %v134 = vlaneseq
    %v135 = vshrl.u32 %v134, 7
    %v136 = vsub.s32 6, %v135
    %v137 = vrot.slane %v30, %v136
    %139 = vbcast.lane.b32.xlu0 %v137, 256
    %v140 = vpop.permute.xlu0 %139
    %v141 = vlaneseq
    %v142 = vshrl.u32 %v141, 7
    %v143 = vsub.s32 7, %v142
    %v144 = vrot.slane %v30, %v143
    %146 = vbcast.lane.b32.xlu0 %v144, 256
    %v147 = vpop.permute.xlu0 %146
    %v148 = vlaneseq
    %v149 = vshrl.u32 %v148, 7
    %v150 = vsub.s32 0, %v149
    %v151 = vrot.slane %v35, %v150
    %153 = vbcast.lane.b32.xlu0 %v151, 256
    %v154 = vpop.permute.xlu0 %153
    %v155 = vlaneseq
    %v156 = vshrl.u32 %v155, 7
    %v157 = vsub.s32 1, %v156
    %v158 = vrot.slane %v35, %v157
    %160 = vbcast.lane.b32.xlu0 %v158, 256
    %v161 = vpop.permute.xlu0 %160
    %v162 = vlaneseq
    %v163 = vshrl.u32 %v162, 7
    %v164 = vsub.s32 0, %v163
    %v165 = vrot.slane %v22, %v164
    %v166 = vmul.f32 %v42, %v165
    %v167 = vmul.f32 %v49, %v165
    %v168 = vmul.f32 %v56, %v165
    %v169 = vmul.f32 %v63, %v165
    %v170 = vmul.f32 %v70, %v165
    %v171 = vmul.f32 %v77, %v165
    %v172 = vmul.f32 %v84, %v165
    %v173 = vmul.f32 %v91, %v165
    %v174 = vmul.f32 %v98, %v165
    %v175 = vmul.f32 %v105, %v165
    %v176 = vmul.f32 %v112, %v165
    %v177 = vmul.f32 %v119, %v165
    %v178 = vmul.f32 %v126, %v165
    %v179 = vmul.f32 %v133, %v165
    %v180 = vmul.f32 %v140, %v165
    %v181 = vmul.f32 %v147, %v165
    %v182 = vadd.f32 %v166, 0.0
    %v183 = vadd.f32 %v167, 0.0
    %v184 = vadd.f32 %v168, 0.0
    %v185 = vadd.f32 %v169, 0.0
    %v186 = vadd.f32 %v170, 0.0
    %v187 = vadd.f32 %v171, 0.0
    %v188 = vadd.f32 %v172, 0.0
    %v189 = vadd.f32 %v173, 0.0
    %v190 = vadd.f32 %v174, 0.0
    %v191 = vadd.f32 %v175, 0.0
    %v192 = vadd.f32 %v176, 0.0
    %v193 = vadd.f32 %v177, 0.0
    %v194 = vadd.f32 %v178, 0.0
    %v195 = vadd.f32 %v179, 0.0
    %v196 = vadd.f32 %v180, 0.0
    %v197 = vadd.f32 %v181, 0.0
    %v198 = vlaneseq
    %v199 = vshrl.u32 %v198, 7
    %v200 = vsub.s32 1, %v199
    %v201 = vrot.slane %v22, %v200
    %v202 = vmul.f32 %v49, %v201
    %v203 = vmul.f32 %v56, %v201
    %v204 = vmul.f32 %v63, %v201
    %v205 = vmul.f32 %v70, %v201
    %v206 = vmul.f32 %v77, %v201
    %v207 = vmul.f32 %v84, %v201
    %v208 = vmul.f32 %v91, %v201
    %v209 = vmul.f32 %v98, %v201
    %v210 = vmul.f32 %v105, %v201
    %v211 = vmul.f32 %v112, %v201
    %v212 = vmul.f32 %v119, %v201
    %v213 = vmul.f32 %v126, %v201
    %v214 = vmul.f32 %v133, %v201
    %v215 = vmul.f32 %v140, %v201
    %v216 = vmul.f32 %v147, %v201
    %v217 = vmul.f32 %v154, %v201
    %v218 = vadd.f32 %v182, %v202
    %v219 = vadd.f32 %v183, %v203
    %v220 = vadd.f32 %v184, %v204
    %v221 = vadd.f32 %v185, %v205
    %v222 = vadd.f32 %v186, %v206
    %v223 = vadd.f32 %v187, %v207
    %v224 = vadd.f32 %v188, %v208
    %v225 = vadd.f32 %v189, %v209
    %v226 = vadd.f32 %v190, %v210
    %v227 = vadd.f32 %v191, %v211
    %v228 = vadd.f32 %v192, %v212
    %v229 = vadd.f32 %v193, %v213
    %v230 = vadd.f32 %v194, %v214
    %v231 = vadd.f32 %v195, %v215
    %v232 = vadd.f32 %v196, %v216
    %v233 = vadd.f32 %v197, %v217
    %v234 = vlaneseq
    %v235 = vshrl.u32 %v234, 7
    %v236 = vsub.s32 2, %v235
    %v237 = vrot.slane %v22, %v236
    %v238 = vmul.f32 %v56, %v237
    %v239 = vmul.f32 %v63, %v237
    %v240 = vmul.f32 %v70, %v237
    %v241 = vmul.f32 %v77, %v237
    %v242 = vmul.f32 %v84, %v237
    %v243 = vmul.f32 %v91, %v237
    %v244 = vmul.f32 %v98, %v237
    %v245 = vmul.f32 %v105, %v237
    %v246 = vmul.f32 %v112, %v237
    %v247 = vmul.f32 %v119, %v237
    %v248 = vmul.f32 %v126, %v237
    %v249 = vmul.f32 %v133, %v237
    %v250 = vmul.f32 %v140, %v237
    %v251 = vmul.f32 %v147, %v237
    %v252 = vmul.f32 %v154, %v237
    %v253 = vmul.f32 %v161, %v237
    %v254 = vadd.f32 %v218, %v238
    %v255 = vadd.f32 %v219, %v239
    %v256 = vadd.f32 %v220, %v240
    %v257 = vadd.f32 %v221, %v241
    %v258 = vadd.f32 %v222, %v242
    %v259 = vadd.f32 %v223, %v243
    %v260 = vadd.f32 %v224, %v244
    %v261 = vadd.f32 %v225, %v245
    %v262 = vadd.f32 %v226, %v246
    %v263 = vadd.f32 %v227, %v247
    %v264 = vadd.f32 %v228, %v248
    %v265 = vadd.f32 %v229, %v249
    %v266 = vadd.f32 %v230, %v250
    %v267 = vadd.f32 %v231, %v251
    %v268 = vadd.f32 %v232, %v252
    %v269 = vadd.f32 %v233, %v253
    %v270 = vlaneseq
    %v271 = vshrl.u32 %v270, 7
    %v272 = vsub.s32 3, %v271
    %v273 = vrot.slane %v22, %v272
    %v275 = vcombine.high %v273, %v273
    %v277 = vunpack.c.l.s4 1983009808
    %v278 = vunpack.c.0.s8 %v277
    %v279 = vlaneseq
    %v280 = vshrl.u32 %v279, 7
    %v281 = vsub.s32 %v278, %v280
    %v282 = vrot.slane %v273, %v281
    %v284 = vunpack.c.l.s4 1983009808
    %v285 = vunpack.c.0.s8 %v284
    %v286 = vlaneseq
    %v287 = vshrl.u32 %v286, 7
    %v288 = vsub.s32 %v285, %v287
    %v289 = vrot.slane %v275, %v288
    %v290 = vcombine.high %v282, %v282
    %v291 = vcombine.high %v289, %v289
    %v296 = vadd.f32 %v254, %v282
    %v297 = vadd.f32 %v255, %v290
    %v298 = vadd.f32 %v256, %v289
    %v299 = vadd.f32 %v257, %v291
    %v300 = vadd.f32 %v258, %v282
    %v301 = vadd.f32 %v259, %v290
    %v302 = vadd.f32 %v260, %v289
    %v303 = vadd.f32 %v261, %v291
    %v304 = vadd.f32 %v262, %v282
    %v305 = vadd.f32 %v263, %v290
    %v306 = vadd.f32 %v264, %v289
    %v307 = vadd.f32 %v265, %v291
    %v308 = vadd.f32 %v266, %v282
    %v309 = vadd.f32 %v267, %v290
    %v310 = vadd.f32 %v268, %v289
    %v311 = vadd.f32 %v269, %v291
    %v312 = vmax.f32 %v296, 0.0
    %v313 = vmax.f32 %v297, 0.0
    %v314 = vmax.f32 %v298, 0.0
    %v315 = vmax.f32 %v299, 0.0
    %v316 = vmax.f32 %v300, 0.0
    %v317 = vmax.f32 %v301, 0.0
    %v318 = vmax.f32 %v302, 0.0
    %v319 = vmax.f32 %v303, 0.0
    %v320 = vmax.f32 %v304, 0.0
    %v321 = vmax.f32 %v305, 0.0
    %v322 = vmax.f32 %v306, 0.0
    %v323 = vmax.f32 %v307, 0.0
    %v324 = vmax.f32 %v308, 0.0
    %v325 = vmax.f32 %v309, 0.0
    %v326 = vmax.f32 %v310, 0.0
    %v327 = vmax.f32 %v311, 0.0
    %v344 = vcombine.low %v312, %v313
    %v345 = vcombine.low %v314, %v315
    %v347 = vunpack.c.l.s4 1983009808
    %v348 = vunpack.c.0.s8 %v347
    %v349 = vlaneseq
    %v350 = vshrl.u32 %v349, 7
    %v351 = vsub.s32 %v348, %v350
    %v352 = vrot.slane %v344, %v351
    %v354 = vunpack.c.l.s4 1983009808
    %v355 = vunpack.c.0.s8 %v354
    %v356 = vlaneseq
    %v357 = vshrl.u32 %v356, 7
    %v358 = vsub.s32 %v355, %v357
    %v359 = vrot.slane %v345, %v358
    %v360 = vcombine.low %v352, %v359
    %v361 = vcombine.low %v316, %v317
    %v362 = vcombine.low %v318, %v319
    %v364 = vunpack.c.l.s4 1983009808
    %v365 = vunpack.c.0.s8 %v364
    %v366 = vlaneseq
    %v367 = vshrl.u32 %v366, 7
    %v368 = vsub.s32 %v365, %v367
    %v369 = vrot.slane %v361, %v368
    %v371 = vunpack.c.l.s4 1983009808
    %v372 = vunpack.c.0.s8 %v371
    %v373 = vlaneseq
    %v374 = vshrl.u32 %v373, 7
    %v375 = vsub.s32 %v372, %v374
    %v376 = vrot.slane %v362, %v375
    %v377 = vcombine.low %v369, %v376
    %v378 = vcombine.low %v320, %v321
    %v379 = vcombine.low %v322, %v323
    %v381 = vunpack.c.l.s4 1983009808
    %v382 = vunpack.c.0.s8 %v381
    %v383 = vlaneseq
    %v384 = vshrl.u32 %v383, 7
    %v385 = vsub.s32 %v382, %v384
    %v386 = vrot.slane %v378, %v385
    %v388 = vunpack.c.l.s4 1983009808
    %v389 = vunpack.c.0.s8 %v388
    %v390 = vlaneseq
    %v391 = vshrl.u32 %v390, 7
    %v392 = vsub.s32 %v389, %v391
    %v393 = vrot.slane %v379, %v392
    %v394 = vcombine.low %v386, %v393
    %v395 = vcombine.low %v324, %v325
    %v396 = vcombine.low %v326, %v327
    %v398 = vunpack.c.l.s4 1983009808
    %v399 = vunpack.c.0.s8 %v398
    %v400 = vlaneseq
    %v401 = vshrl.u32 %v400, 7
    %v402 = vsub.s32 %v399, %v401
    %v403 = vrot.slane %v395, %v402
    %v405 = vunpack.c.l.s4 1983009808
    %v406 = vunpack.c.0.s8 %v405
    %v407 = vlaneseq
    %v408 = vshrl.u32 %v407, 7
    %v409 = vsub.s32 %v406, %v408
    %v410 = vrot.slane %v396, %v409
    %v411 = vcombine.low %v403, %v410
    %v416 = vpack.c.bf16 %v377, %v360
    %v417 = vpack.c.bf16 %v411, %v394
    %v418 = vld [vmem:[%s1] sm:$0xf]
    %v419 = vld [vmem:[%s1 + $0x4] sm:$0xf]
    %v420 = vlaneseq
    %v421 = vshrl.u32 %v420, 7
    %v422 = vsub.s32 4, %v421
    %v423 = vrot.slane %v22, %v422
    %v426 = vunpack.c.l.b16 %v418
    %v427 = vunpack.c.l.b16 %v419
    %v428 = vpack.c.b16 %v427, %v426
    %vm430 = vcmask 130048
    %v432 = vsel %vm430, %v416, 0
    %v435 = vsel %vm430, %v417, 0
    %437 = vmatprep.subr.bf16.mxu0 0
    %438 = vmatpush1.bf16.msra.mxu0 0
    %439 = vmatprep.subr.bf16.mxu0 0
    %440 = vmatpush1.bf16.msra.mxu0 0
    %441 = vmatprep.subr.bf16.mxu0 0
    %442 = vmatpush1.bf16.msra.mxu0 0
    %443 = vmatprep.subr.bf16.mxu0 0
    %444 = vmatpush1.bf16.msra.mxu0 0
    %445 = vmatprep.subr.bf16.mxu0 0
    %446 = vmatpush1.bf16.msra.mxu0 0
    %447 = vmatprep.subr.bf16.mxu0 0
    %448 = vmatpush1.bf16.msra.mxu0 0
    %449 = vmatprep.subr.bf16.mxu0 0
    %450 = vmatpush1.bf16.msra.mxu0 0
    %451 = vmatprep.subr.bf16.mxu0 0
    %452 = vmatpush1.bf16.msra.mxu0 %v428
    %453 = vmatprep.subr.bf16.mxu0 0
    %454 = vmatpush2.bf16.msra.mxu0 0
    %455 = vmatprep.subr.bf16.mxu0 0
    %456 = vmatpush2.bf16.msra.mxu0 0
    %457 = vmatprep.subr.bf16.mxu0 0
    %458 = vmatpush2.bf16.msra.mxu0 0
    %459 = vmatprep.subr.bf16.mxu0 0
    %460 = vmatpush2.bf16.msra.mxu0 0
    %461 = vmatprep.subr.bf16.mxu0 0
    %462 = vmatpush2.bf16.msra.mxu0 0
    %463 = vmatprep.subr.bf16.mxu0 0
    %464 = vmatpush2.bf16.msra.mxu0 0
    %465 = vmatprep.subr.bf16.mxu0 0
    %466 = vmatpush2.bf16.msra.mxu0 0
    %467 = vmatprep.subr.bf16.mxu0 0
    %468 = vmatpush2.bf16.msra.mxu0 0
    %469 = vmatprep.mubr.bf16.mxu0 0
    %470 = vmatmul.mubr.bf16.gmra.mxu0 %v432
    %v471 = vpop.f32.mrf.mxu0
    %v472 = vadd.f32 %v423, %v471
    %v473 = vpop.f32.mrf.mxu0
    %v474 = vpop.f32.mrf.mxu0
    %v475 = vadd.f32 %v423, %v474
    %v476 = vpop.f32.mrf.mxu0
    %477 = vmatprep.mubr.bf16.mxu0 0
    %478 = vmatmul.mubr.bf16.gmra.mxu0 %v435
    %v479 = vpop.f32.mrf.mxu0
    %v480 = vadd.f32 %v423, %v479
    %v481 = vpop.f32.mrf.mxu0
    %v482 = vpop.f32.mrf.mxu0
    %v483 = vadd.f32 %v423, %v482
    %v484 = vpop.f32.mrf.mxu0
    %485 = vdwg.mxu0
    %v490 = vcombine.high %v472, %v472
    %v492 = vunpack.c.l.s4 1983009808
    %v493 = vunpack.c.0.s8 %v492
    %v494 = vlaneseq
    %v495 = vshrl.u32 %v494, 7
    %v496 = vsub.s32 %v493, %v495
    %v497 = vrot.slane %v472, %v496
    %v499 = vunpack.c.l.s4 1983009808
    %v500 = vunpack.c.0.s8 %v499
    %v501 = vlaneseq
    %v502 = vshrl.u32 %v501, 7
    %v503 = vsub.s32 %v500, %v502
    %v504 = vrot.slane %v490, %v503
    %v505 = vcombine.high %v497, %v497
    %v506 = vcombine.high %v504, %v504
    %v507 = vcombine.high %v475, %v475
    %v509 = vunpack.c.l.s4 1983009808
    %v510 = vunpack.c.0.s8 %v509
    %v511 = vlaneseq
    %v512 = vshrl.u32 %v511, 7
    %v513 = vsub.s32 %v510, %v512
    %v514 = vrot.slane %v475, %v513
    %v516 = vunpack.c.l.s4 1983009808
    %v517 = vunpack.c.0.s8 %v516
    %v518 = vlaneseq
    %v519 = vshrl.u32 %v518, 7
    %v520 = vsub.s32 %v517, %v519
    %v521 = vrot.slane %v507, %v520
    %v522 = vcombine.high %v514, %v514
    %v523 = vcombine.high %v521, %v521
    %v524 = vcombine.high %v480, %v480
    %v526 = vunpack.c.l.s4 1983009808
    %v527 = vunpack.c.0.s8 %v526
    %v528 = vlaneseq
    %v529 = vshrl.u32 %v528, 7
    %v530 = vsub.s32 %v527, %v529
    %v531 = vrot.slane %v480, %v530
    %v533 = vunpack.c.l.s4 1983009808
    %v534 = vunpack.c.0.s8 %v533
    %v535 = vlaneseq
    %v536 = vshrl.u32 %v535, 7
    %v537 = vsub.s32 %v534, %v536
    %v538 = vrot.slane %v524, %v537
    %v539 = vcombine.high %v531, %v531
    %v540 = vcombine.high %v538, %v538
    %v541 = vcombine.high %v483, %v483
    %v543 = vunpack.c.l.s4 1983009808
    %v544 = vunpack.c.0.s8 %v543
    %v545 = vlaneseq
    %v546 = vshrl.u32 %v545, 7
    %v547 = vsub.s32 %v544, %v546
    %v548 = vrot.slane %v483, %v547
    %v550 = vunpack.c.l.s4 1983009808
    %v551 = vunpack.c.0.s8 %v550
    %v552 = vlaneseq
    %v553 = vshrl.u32 %v552, 7
    %v554 = vsub.s32 %v551, %v553
    %v555 = vrot.slane %v541, %v554
    %v556 = vcombine.high %v548, %v548
    %v557 = vcombine.high %v555, %v555
    %vm574 = vcmask 779264
    %575 = vst.msk [vmem:[#allocation2] sm:$0x3] %vm574, %v497
    %576 = vst.msk [vmem:[#allocation2 + $0x2] sm:$0x3] %vm574, %v505
    %577 = vst.msk [vmem:[#allocation2 + $0x4] sm:$0x3] %vm574, %v504
    %578 = vst.msk [vmem:[#allocation2 + $0x6] sm:$0x3] %vm574, %v506
    %579 = vst.msk [vmem:[#allocation2 + $0x8] sm:$0x3] %vm574, %v514
    %580 = vst.msk [vmem:[#allocation2 + $0xa] sm:$0x3] %vm574, %v522
    %581 = vst.msk [vmem:[#allocation2 + $0xc] sm:$0x3] %vm574, %v521
    %582 = vst.msk [vmem:[#allocation2 + $0xe] sm:$0x3] %vm574, %v523
    %583 = vst.msk [vmem:[#allocation2 + $0x10] sm:$0x3] %vm574, %v531
    %584 = vst.msk [vmem:[#allocation2 + $0x12] sm:$0x3] %vm574, %v539
    %585 = vst.msk [vmem:[#allocation2 + $0x14] sm:$0x3] %vm574, %v538
    %586 = vst.msk [vmem:[#allocation2 + $0x16] sm:$0x3] %vm574, %v540
    %587 = vst.msk [vmem:[#allocation2 + $0x18] sm:$0x3] %vm574, %v548
    %588 = vst.msk [vmem:[#allocation2 + $0x1a] sm:$0x3] %vm574, %v556
    %589 = vst.msk [vmem:[#allocation2 + $0x1c] sm:$0x3] %vm574, %v555
    %590 = vst.msk [vmem:[#allocation2 + $0x1e] sm:$0x3] %vm574, %v557
    %v591 = vld [vmem:[%s2] sm:$0xf]
    %v592 = vld [vmem:[%s2 + $0x4] sm:$0xf]
    %v593 = vld [vmem:[%s2 + $0x8] sm:$0xf]
    %v594 = vld [vmem:[%s2 + $0xc] sm:$0xf]
    %v595 = vld [vmem:[#allocation2] sm:$0x3]
    %v596 = vxor.u32 %v595, 2147483648
    %v597 = vmul.f32 %v596, 1.442695
    %v598 = vpow.pop %v597
    %v599 = vadd.f32 %v598, 1.0
    %v600 = vrcp.pop %v599
    %v601 = vmul.f32 1.0, %v600
    %v602 = vlaneseq
    %v603 = vshrl.u32 %v602, 7
    %v604 = vsub.s32 5, %v603
    %v605 = vrot.slane %v22, %v604
    %v606 = vmul.f32 %v601, %v605
    %608 = vrot.lane.b32.xlu0 %v606, 64
    %v609 = vpop.permute.xlu0 %608
    %v611 = vadd.f32 %v595, %v609
    %v612 = vtanh.pop %v611
    %614 = vrot.lane.b32.xlu0 %v612, 96
    %v615 = vpop.permute.xlu0 %614
    %v617 = vmul.f32 %v601, %v615
    %619 = vrot.lane.b32.xlu0 %v617, 32
    %v620 = vpop.permute.xlu0 %619
    %v622 = vsub.f32 %v612, %v620
    %s623 = scalar_lea.vmem [#allocation2], 2
    %v624 = vld [vmem:[%s623] sm:$0x3]
    %v625 = vpack.c.bf16 %v622, %v622
    %627 = vrot.lane.b32.xlu0 %v625, 64
    %v628 = vpop.permute.xlu0 %627
    %v633 = vunpack.c.l.b16 %v591
    %v634 = vunpack.c.l.b16 %v592
    %v635 = vunpack.c.l.b16 %v593
    %v636 = vunpack.c.l.b16 %v594
    %v637 = vpack.c.b16 %v634, %v633
    %v638 = vpack.c.b16 %v636, %v635
    %vm641 = vcmask 261120
    %v643 = vsel %vm641, %v628, 0
    %645 = vmatprep.subr.bf16.mxu0 0
    %646 = vmatpush1.bf16.msra.mxu0 0
    %647 = vmatprep.subr.bf16.mxu0 0
    %648 = vmatpush1.bf16.msra.mxu0 0
    %649 = vmatprep.subr.bf16.mxu0 0
    %650 = vmatpush1.bf16.msra.mxu0 0
    %651 = vmatprep.subr.bf16.mxu0 0
    %652 = vmatpush1.bf16.msra.mxu0 0
    %653 = vmatprep.subr.bf16.mxu0 0
    %654 = vmatpush1.bf16.msra.mxu0 0
    %655 = vmatprep.subr.bf16.mxu0 0
    %656 = vmatpush1.bf16.msra.mxu0 0
    %657 = vmatprep.subr.bf16.mxu0 0
    %658 = vmatpush1.bf16.msra.mxu0 %v638
    %659 = vmatprep.subr.bf16.mxu0 0
    %660 = vmatpush1.bf16.msra.mxu0 %v637
    %661 = vmatprep.subr.bf16.mxu0 0
    %662 = vmatpush2.bf16.msra.mxu0 0
    %663 = vmatprep.subr.bf16.mxu0 0
    %664 = vmatpush2.bf16.msra.mxu0 0
    %665 = vmatprep.subr.bf16.mxu0 0
    %666 = vmatpush2.bf16.msra.mxu0 0
    %667 = vmatprep.subr.bf16.mxu0 0
    %668 = vmatpush2.bf16.msra.mxu0 0
    %669 = vmatprep.subr.bf16.mxu0 0
    %670 = vmatpush2.bf16.msra.mxu0 0
    %671 = vmatprep.subr.bf16.mxu0 0
    %672 = vmatpush2.bf16.msra.mxu0 0
    %673 = vmatprep.subr.bf16.mxu0 0
    %674 = vmatpush2.bf16.msra.mxu0 0
    %675 = vmatprep.subr.bf16.mxu0 0
    %676 = vmatpush2.bf16.msra.mxu0 0
    %677 = vmatprep.mubr.bf16.mxu0 0
    %678 = vmatmul.mubr.bf16.gmra.mxu0 %v643
    %v679 = vpop.f32.mrf.mxu0
    %v680 = vadd.f32 0.0, %v679
    %v681 = vpop.f32.mrf.mxu0
    %v682 = vpop.f32.mrf.mxu0
    %v683 = vpop.f32.mrf.mxu0
    %684 = vdwg.mxu0
    %v685 = vadd.f32 %v624, %v680
    %v686 = vxor.u32 %v685, 2147483648
    %v687 = vmul.f32 %v686, 1.442695
    %v688 = vpow.pop %v687
    %v689 = vadd.f32 %v688, 1.0
    %v690 = vrcp.pop %v689
    %v691 = vmul.f32 1.0, %v690
    %693 = vrot.lane.b32.xlu0 %v605, 64
    %v694 = vpop.permute.xlu0 %693
    %v696 = vadd.f32 %v680, %v694
    %698 = vrot.lane.b32.xlu0 %v696, 64
    %v699 = vpop.permute.xlu0 %698
    %v701 = vmul.f32 %v691, %v699
    %703 = vrot.lane.b32.xlu0 %v701, 64
    %v704 = vpop.permute.xlu0 %703
    %v706 = vadd.f32 %v624, %v704
    %v707 = vtanh.pop %v706
    %v708 = vsub.f32 %v622, %v707
    %710 = vrot.lane.b32.xlu0 %v708, 96
    %v711 = vpop.permute.xlu0 %710
    %v713 = vmul.f32 %v691, %v711
    %715 = vrot.lane.b32.xlu0 %v713, 32
    %v716 = vpop.permute.xlu0 %715
    %v718 = vadd.f32 %v707, %v716
    %s719 = scalar_lea.vmem [#allocation2], 4
    %v720 = vld [vmem:[%s719] sm:$0x3]
    %v721 = vpack.c.bf16 %v718, %v718
    %723 = vrot.lane.b32.xlu0 %v721, 64
    %v724 = vpop.permute.xlu0 %723
    %v726 = vsel %vm641, %v724, 0
    %728 = vmatprep.subr.bf16.mxu0 0
    %729 = vmatpush1.bf16.msra.mxu0 0
    %730 = vmatprep.subr.bf16.mxu0 0
    %731 = vmatpush1.bf16.msra.mxu0 0
    %732 = vmatprep.subr.bf16.mxu0 0
    %733 = vmatpush1.bf16.msra.mxu0 0
    %734 = vmatprep.subr.bf16.mxu0 0
    %735 = vmatpush1.bf16.msra.mxu0 0
    %736 = vmatprep.subr.bf16.mxu0 0
    %737 = vmatpush1.bf16.msra.mxu0 0
    %738 = vmatprep.subr.bf16.mxu0 0
    %739 = vmatpush1.bf16.msra.mxu0 0
    %740 = vmatprep.subr.bf16.mxu0 0
    %741 = vmatpush1.bf16.msra.mxu0 %v638
    %742 = vmatprep.subr.bf16.mxu0 0
    %743 = vmatpush1.bf16.msra.mxu0 %v637
    %744 = vmatprep.subr.bf16.mxu0 0
    %745 = vmatpush2.bf16.msra.mxu0 0
    %746 = vmatprep.subr.bf16.mxu0 0
    %747 = vmatpush2.bf16.msra.mxu0 0
    %748 = vmatprep.subr.bf16.mxu0 0
    %749 = vmatpush2.bf16.msra.mxu0 0
    %750 = vmatprep.subr.bf16.mxu0 0
    %751 = vmatpush2.bf16.msra.mxu0 0
    %752 = vmatprep.subr.bf16.mxu0 0
    %753 = vmatpush2.bf16.msra.mxu0 0
    %754 = vmatprep.subr.bf16.mxu0 0
    %755 = vmatpush2.bf16.msra.mxu0 0
    %756 = vmatprep.subr.bf16.mxu0 0
    %757 = vmatpush2.bf16.msra.mxu0 0
    %758 = vmatprep.subr.bf16.mxu0 0
    %759 = vmatpush2.bf16.msra.mxu0 0
    %760 = vmatprep.mubr.bf16.mxu0 0
    %761 = vmatmul.mubr.bf16.gmra.mxu0 %v726
    %v762 = vpop.f32.mrf.mxu0
    %v763 = vadd.f32 0.0, %v762
    %v764 = vpop.f32.mrf.mxu0
    %v765 = vpop.f32.mrf.mxu0
    %v766 = vpop.f32.mrf.mxu0
    %767 = vdwg.mxu0
    %v768 = vadd.f32 %v720, %v763
    %v769 = vxor.u32 %v768, 2147483648
    %v770 = vmul.f32 %v769, 1.442695
    %v771 = vpow.pop %v770
    %v772 = vadd.f32 %v771, 1.0
    %v773 = vrcp.pop %v772
    %v774 = vmul.f32 1.0, %v773
    %v775 = vadd.f32 %v763, %v694
    %777 = vrot.lane.b32.xlu0 %v775, 64
    %v778 = vpop.permute.xlu0 %777
    %v780 = vmul.f32 %v774, %v778
    %782 = vrot.lane.b32.xlu0 %v780, 64
    %v783 = vpop.permute.xlu0 %782
    %v785 = vadd.f32 %v720, %v783
    %v786 = vtanh.pop %v785
    %v787 = vsub.f32 %v718, %v786
    %789 = vrot.lane.b32.xlu0 %v787, 96
    %v790 = vpop.permute.xlu0 %789
    %v792 = vmul.f32 %v774, %v790
    %794 = vrot.lane.b32.xlu0 %v792, 32
    %v795 = vpop.permute.xlu0 %794
    %v797 = vadd.f32 %v786, %v795
    %s798 = scalar_lea.vmem [#allocation2], 6
    %v799 = vld [vmem:[%s798] sm:$0x3]
    %v800 = vpack.c.bf16 %v797, %v797
    %802 = vrot.lane.b32.xlu0 %v800, 64
    %v803 = vpop.permute.xlu0 %802
    %v805 = vsel %vm641, %v803, 0
    %807 = vmatprep.subr.bf16.mxu0 0
    %808 = vmatpush1.bf16.msra.mxu0 0
    %809 = vmatprep.subr.bf16.mxu0 0
    %810 = vmatpush1.bf16.msra.mxu0 0
    %811 = vmatprep.subr.bf16.mxu0 0
    %812 = vmatpush1.bf16.msra.mxu0 0
    %813 = vmatprep.subr.bf16.mxu0 0
    %814 = vmatpush1.bf16.msra.mxu0 0
    %815 = vmatprep.subr.bf16.mxu0 0
    %816 = vmatpush1.bf16.msra.mxu0 0
    %817 = vmatprep.subr.bf16.mxu0 0
    %818 = vmatpush1.bf16.msra.mxu0 0
    %819 = vmatprep.subr.bf16.mxu0 0
    %820 = vmatpush1.bf16.msra.mxu0 %v638
    %821 = vmatprep.subr.bf16.mxu0 0
    %822 = vmatpush1.bf16.msra.mxu0 %v637
    %823 = vmatprep.subr.bf16.mxu0 0
    %824 = vmatpush2.bf16.msra.mxu0 0
    %825 = vmatprep.subr.bf16.mxu0 0
    %826 = vmatpush2.bf16.msra.mxu0 0
    %827 = vmatprep.subr.bf16.mxu0 0
    %828 = vmatpush2.bf16.msra.mxu0 0
    %829 = vmatprep.subr.bf16.mxu0 0
    %830 = vmatpush2.bf16.msra.mxu0 0
    %831 = vmatprep.subr.bf16.mxu0 0
    %832 = vmatpush2.bf16.msra.mxu0 0
    %833 = vmatprep.subr.bf16.mxu0 0
    %834 = vmatpush2.bf16.msra.mxu0 0
    %835 = vmatprep.subr.bf16.mxu0 0
    %836 = vmatpush2.bf16.msra.mxu0 0
    %837 = vmatprep.subr.bf16.mxu0 0
    %838 = vmatpush2.bf16.msra.mxu0 0
    %839 = vmatprep.mubr.bf16.mxu0 0
    %840 = vmatmul.mubr.bf16.gmra.mxu0 %v805
    %v841 = vpop.f32.mrf.mxu0
    %v842 = vadd.f32 0.0, %v841
    %v843 = vpop.f32.mrf.mxu0
    %v844 = vpop.f32.mrf.mxu0
    %v845 = vpop.f32.mrf.mxu0
    %846 = vdwg.mxu0
    %v847 = vadd.f32 %v799, %v842
    %v848 = vxor.u32 %v847, 2147483648
    %v849 = vmul.f32 %v848, 1.442695
    %v850 = vpow.pop %v849
    %v851 = vadd.f32 %v850, 1.0
    %v852 = vrcp.pop %v851
    %v853 = vmul.f32 1.0, %v852
    %v854 = vadd.f32 %v842, %v694
    %856 = vrot.lane.b32.xlu0 %v854, 64
    %v857 = vpop.permute.xlu0 %856
    %v859 = vmul.f32 %v853, %v857
    %861 = vrot.lane.b32.xlu0 %v859, 64
    %v862 = vpop.permute.xlu0 %861
    %v864 = vadd.f32 %v799, %v862
    %v865 = vtanh.pop %v864
    %v866 = vsub.f32 %v797, %v865
    %868 = vrot.lane.b32.xlu0 %v866, 96
    %v869 = vpop.permute.xlu0 %868
    %v871 = vmul.f32 %v853, %v869
    %873 = vrot.lane.b32.xlu0 %v871, 32
    %v874 = vpop.permute.xlu0 %873
    %v876 = vadd.f32 %v865, %v874
    %s877 = scalar_lea.vmem [#allocation2], 8
    %v878 = vld [vmem:[%s877] sm:$0x3]
    %v879 = vpack.c.bf16 %v876, %v876
    %881 = vrot.lane.b32.xlu0 %v879, 64
    %v882 = vpop.permute.xlu0 %881
    %v884 = vsel %vm641, %v882, 0
    %886 = vmatprep.subr.bf16.mxu0 0
    %887 = vmatpush1.bf16.msra.mxu0 0
    %888 = vmatprep.subr.bf16.mxu0 0
    %889 = vmatpush1.bf16.msra.mxu0 0
    %890 = vmatprep.subr.bf16.mxu0 0
    %891 = vmatpush1.bf16.msra.mxu0 0
    %892 = vmatprep.subr.bf16.mxu0 0
    %893 = vmatpush1.bf16.msra.mxu0 0
    %894 = vmatprep.subr.bf16.mxu0 0
    %895 = vmatpush1.bf16.msra.mxu0 0
    %896 = vmatprep.subr.bf16.mxu0 0
    %897 = vmatpush1.bf16.msra.mxu0 0
    %898 = vmatprep.subr.bf16.mxu0 0
    %899 = vmatpush1.bf16.msra.mxu0 %v638
    %900 = vmatprep.subr.bf16.mxu0 0
    %901 = vmatpush1.bf16.msra.mxu0 %v637
    %902 = vmatprep.subr.bf16.mxu0 0
    %903 = vmatpush2.bf16.msra.mxu0 0
    %904 = vmatprep.subr.bf16.mxu0 0
    %905 = vmatpush2.bf16.msra.mxu0 0
    %906 = vmatprep.subr.bf16.mxu0 0
    %907 = vmatpush2.bf16.msra.mxu0 0
    %908 = vmatprep.subr.bf16.mxu0 0
    %909 = vmatpush2.bf16.msra.mxu0 0
    %910 = vmatprep.subr.bf16.mxu0 0
    %911 = vmatpush2.bf16.msra.mxu0 0
    %912 = vmatprep.subr.bf16.mxu0 0
    %913 = vmatpush2.bf16.msra.mxu0 0
    %914 = vmatprep.subr.bf16.mxu0 0
    %915 = vmatpush2.bf16.msra.mxu0 0
    %916 = vmatprep.subr.bf16.mxu0 0
    %917 = vmatpush2.bf16.msra.mxu0 0
    %918 = vmatprep.mubr.bf16.mxu0 0
    %919 = vmatmul.mubr.bf16.gmra.mxu0 %v884
    %v920 = vpop.f32.mrf.mxu0
    %v921 = vadd.f32 0.0, %v920
    %v922 = vpop.f32.mrf.mxu0
    %v923 = vpop.f32.mrf.mxu0
    %v924 = vpop.f32.mrf.mxu0
    %925 = vdwg.mxu0
    %v926 = vadd.f32 %v878, %v921
    %v927 = vxor.u32 %v926, 2147483648
    %v928 = vmul.f32 %v927, 1.442695
    %v929 = vpow.pop %v928
    %v930 = vadd.f32 %v929, 1.0
    %v931 = vrcp.pop %v930
    %v932 = vmul.f32 1.0, %v931
    %v933 = vadd.f32 %v921, %v694
    %935 = vrot.lane.b32.xlu0 %v933, 64
    %v936 = vpop.permute.xlu0 %935
    %v938 = vmul.f32 %v932, %v936
    %940 = vrot.lane.b32.xlu0 %v938, 64
    %v941 = vpop.permute.xlu0 %940
    %v943 = vadd.f32 %v878, %v941
    %v944 = vtanh.pop %v943
    %v945 = vsub.f32 %v876, %v944
    %947 = vrot.lane.b32.xlu0 %v945, 96
    %v948 = vpop.permute.xlu0 %947
    %v950 = vmul.f32 %v932, %v948
    %952 = vrot.lane.b32.xlu0 %v950, 32
    %v953 = vpop.permute.xlu0 %952
    %v955 = vadd.f32 %v944, %v953
    %s956 = scalar_lea.vmem [#allocation2], 10
    %v957 = vld [vmem:[%s956] sm:$0x3]
    %v958 = vpack.c.bf16 %v955, %v955
    %960 = vrot.lane.b32.xlu0 %v958, 64
    %v961 = vpop.permute.xlu0 %960
    %v963 = vsel %vm641, %v961, 0
    %965 = vmatprep.subr.bf16.mxu0 0
    %966 = vmatpush1.bf16.msra.mxu0 0
    %967 = vmatprep.subr.bf16.mxu0 0
    %968 = vmatpush1.bf16.msra.mxu0 0
    %969 = vmatprep.subr.bf16.mxu0 0
    %970 = vmatpush1.bf16.msra.mxu0 0
    %971 = vmatprep.subr.bf16.mxu0 0
    %972 = vmatpush1.bf16.msra.mxu0 0
    %973 = vmatprep.subr.bf16.mxu0 0
    %974 = vmatpush1.bf16.msra.mxu0 0
    %975 = vmatprep.subr.bf16.mxu0 0
    %976 = vmatpush1.bf16.msra.mxu0 0
    %977 = vmatprep.subr.bf16.mxu0 0
    %978 = vmatpush1.bf16.msra.mxu0 %v638
    %979 = vmatprep.subr.bf16.mxu0 0
    %980 = vmatpush1.bf16.msra.mxu0 %v637
    %981 = vmatprep.subr.bf16.mxu0 0
    %982 = vmatpush2.bf16.msra.mxu0 0
    %983 = vmatprep.subr.bf16.mxu0 0
    %984 = vmatpush2.bf16.msra.mxu0 0
    %985 = vmatprep.subr.bf16.mxu0 0
    %986 = vmatpush2.bf16.msra.mxu0 0
    %987 = vmatprep.subr.bf16.mxu0 0
    %988 = vmatpush2.bf16.msra.mxu0 0
    %989 = vmatprep.subr.bf16.mxu0 0
    %990 = vmatpush2.bf16.msra.mxu0 0
    %991 = vmatprep.subr.bf16.mxu0 0
    %992 = vmatpush2.bf16.msra.mxu0 0
    %993 = vmatprep.subr.bf16.mxu0 0
    %994 = vmatpush2.bf16.msra.mxu0 0
    %995 = vmatprep.subr.bf16.mxu0 0
    %996 = vmatpush2.bf16.msra.mxu0 0
    %997 = vmatprep.mubr.bf16.mxu0 0
    %998 = vmatmul.mubr.bf16.gmra.mxu0 %v963
    %v999 = vpop.f32.mrf.mxu0
    %v1000 = vadd.f32 0.0, %v999
    %v1001 = vpop.f32.mrf.mxu0
    %v1002 = vpop.f32.mrf.mxu0
    %v1003 = vpop.f32.mrf.mxu0
    %1004 = vdwg.mxu0
    %v1005 = vadd.f32 %v957, %v1000
    %v1006 = vxor.u32 %v1005, 2147483648
    %v1007 = vmul.f32 %v1006, 1.442695
    %v1008 = vpow.pop %v1007
    %v1009 = vadd.f32 %v1008, 1.0
    %v1010 = vrcp.pop %v1009
    %v1011 = vmul.f32 1.0, %v1010
    %v1012 = vadd.f32 %v1000, %v694
    %1014 = vrot.lane.b32.xlu0 %v1012, 64
    %v1015 = vpop.permute.xlu0 %1014
    %v1017 = vmul.f32 %v1011, %v1015
    %1019 = vrot.lane.b32.xlu0 %v1017, 64
    %v1020 = vpop.permute.xlu0 %1019
    %v1022 = vadd.f32 %v957, %v1020
    %v1023 = vtanh.pop %v1022
    %v1024 = vsub.f32 %v955, %v1023
    %1026 = vrot.lane.b32.xlu0 %v1024, 96
    %v1027 = vpop.permute.xlu0 %1026
    %v1029 = vmul.f32 %v1011, %v1027
    %1031 = vrot.lane.b32.xlu0 %v1029, 32
    %v1032 = vpop.permute.xlu0 %1031
    %v1034 = vadd.f32 %v1023, %v1032
    %s1035 = scalar_lea.vmem [#allocation2], 12
    %v1036 = vld [vmem:[%s1035] sm:$0x3]
    %v1037 = vpack.c.bf16 %v1034, %v1034
    %1039 = vrot.lane.b32.xlu0 %v1037, 64
    %v1040 = vpop.permute.xlu0 %1039
    %v1042 = vsel %vm641, %v1040, 0
    %1044 = vmatprep.subr.bf16.mxu0 0
    %1045 = vmatpush1.bf16.msra.mxu0 0
    %1046 = vmatprep.subr.bf16.mxu0 0
    %1047 = vmatpush1.bf16.msra.mxu0 0
    %1048 = vmatprep.subr.bf16.mxu0 0
    %1049 = vmatpush1.bf16.msra.mxu0 0
    %1050 = vmatprep.subr.bf16.mxu0 0
    %1051 = vmatpush1.bf16.msra.mxu0 0
    %1052 = vmatprep.subr.bf16.mxu0 0
    %1053 = vmatpush1.bf16.msra.mxu0 0
    %1054 = vmatprep.subr.bf16.mxu0 0
    %1055 = vmatpush1.bf16.msra.mxu0 0
    %1056 = vmatprep.subr.bf16.mxu0 0
    %1057 = vmatpush1.bf16.msra.mxu0 %v638
    %1058 = vmatprep.subr.bf16.mxu0 0
    %1059 = vmatpush1.bf16.msra.mxu0 %v637
    %1060 = vmatprep.subr.bf16.mxu0 0
    %1061 = vmatpush2.bf16.msra.mxu0 0
    %1062 = vmatprep.subr.bf16.mxu0 0
    %1063 = vmatpush2.bf16.msra.mxu0 0
    %1064 = vmatprep.subr.bf16.mxu0 0
    %1065 = vmatpush2.bf16.msra.mxu0 0
    %1066 = vmatprep.subr.bf16.mxu0 0
    %1067 = vmatpush2.bf16.msra.mxu0 0
    %1068 = vmatprep.subr.bf16.mxu0 0
    %1069 = vmatpush2.bf16.msra.mxu0 0
    %1070 = vmatprep.subr.bf16.mxu0 0
    %1071 = vmatpush2.bf16.msra.mxu0 0
    %1072 = vmatprep.subr.bf16.mxu0 0
    %1073 = vmatpush2.bf16.msra.mxu0 0
    %1074 = vmatprep.subr.bf16.mxu0 0
    %1075 = vmatpush2.bf16.msra.mxu0 0
    %1076 = vmatprep.mubr.bf16.mxu0 0
    %1077 = vmatmul.mubr.bf16.gmra.mxu0 %v1042
    %v1078 = vpop.f32.mrf.mxu0
    %v1079 = vadd.f32 0.0, %v1078
    %v1080 = vpop.f32.mrf.mxu0
    %v1081 = vpop.f32.mrf.mxu0
    %v1082 = vpop.f32.mrf.mxu0
    %1083 = vdwg.mxu0
    %v1084 = vadd.f32 %v1036, %v1079
    %v1085 = vxor.u32 %v1084, 2147483648
    %v1086 = vmul.f32 %v1085, 1.442695
    %v1087 = vpow.pop %v1086
    %v1088 = vadd.f32 %v1087, 1.0
    %v1089 = vrcp.pop %v1088
    %v1090 = vmul.f32 1.0, %v1089
    %v1091 = vadd.f32 %v1079, %v694
    %1093 = vrot.lane.b32.xlu0 %v1091, 64
    %v1094 = vpop.permute.xlu0 %1093
    %v1096 = vmul.f32 %v1090, %v1094
    %1098 = vrot.lane.b32.xlu0 %v1096, 64
    %v1099 = vpop.permute.xlu0 %1098
    %v1101 = vadd.f32 %v1036, %v1099
    %v1102 = vtanh.pop %v1101
    %v1103 = vsub.f32 %v1034, %v1102
    %1105 = vrot.lane.b32.xlu0 %v1103, 96
    %v1106 = vpop.permute.xlu0 %1105
    %v1108 = vmul.f32 %v1090, %v1106
    %1110 = vrot.lane.b32.xlu0 %v1108, 32
    %v1111 = vpop.permute.xlu0 %1110
    %v1113 = vadd.f32 %v1102, %v1111
    %s1114 = scalar_lea.vmem [#allocation2], 14
    %v1115 = vld [vmem:[%s1114] sm:$0x3]
    %v1116 = vpack.c.bf16 %v1113, %v1113
    %1118 = vrot.lane.b32.xlu0 %v1116, 64
    %v1119 = vpop.permute.xlu0 %1118
    %v1121 = vsel %vm641, %v1119, 0
    %1123 = vmatprep.subr.bf16.mxu0 0
    %1124 = vmatpush1.bf16.msra.mxu0 0
    %1125 = vmatprep.subr.bf16.mxu0 0
    %1126 = vmatpush1.bf16.msra.mxu0 0
    %1127 = vmatprep.subr.bf16.mxu0 0
    %1128 = vmatpush1.bf16.msra.mxu0 0
    %1129 = vmatprep.subr.bf16.mxu0 0
    %1130 = vmatpush1.bf16.msra.mxu0 0
    %1131 = vmatprep.subr.bf16.mxu0 0
    %1132 = vmatpush1.bf16.msra.mxu0 0
    %1133 = vmatprep.subr.bf16.mxu0 0
    %1134 = vmatpush1.bf16.msra.mxu0 0
    %1135 = vmatprep.subr.bf16.mxu0 0
    %1136 = vmatpush1.bf16.msra.mxu0 %v638
    %1137 = vmatprep.subr.bf16.mxu0 0
    %1138 = vmatpush1.bf16.msra.mxu0 %v637
    %1139 = vmatprep.subr.bf16.mxu0 0
    %1140 = vmatpush2.bf16.msra.mxu0 0
    %1141 = vmatprep.subr.bf16.mxu0 0
    %1142 = vmatpush2.bf16.msra.mxu0 0
    %1143 = vmatprep.subr.bf16.mxu0 0
    %1144 = vmatpush2.bf16.msra.mxu0 0
    %1145 = vmatprep.subr.bf16.mxu0 0
    %1146 = vmatpush2.bf16.msra.mxu0 0
    %1147 = vmatprep.subr.bf16.mxu0 0
    %1148 = vmatpush2.bf16.msra.mxu0 0
    %1149 = vmatprep.subr.bf16.mxu0 0
    %1150 = vmatpush2.bf16.msra.mxu0 0
    %1151 = vmatprep.subr.bf16.mxu0 0
    %1152 = vmatpush2.bf16.msra.mxu0 0
    %1153 = vmatprep.subr.bf16.mxu0 0
    %1154 = vmatpush2.bf16.msra.mxu0 0
    %1155 = vmatprep.mubr.bf16.mxu0 0
    %1156 = vmatmul.mubr.bf16.gmra.mxu0 %v1121
    %v1157 = vpop.f32.mrf.mxu0
    %v1158 = vadd.f32 0.0, %v1157
    %v1159 = vpop.f32.mrf.mxu0
    %v1160 = vpop.f32.mrf.mxu0
    %v1161 = vpop.f32.mrf.mxu0
    %1162 = vdwg.mxu0
    %v1163 = vadd.f32 %v1115, %v1158
    %v1164 = vxor.u32 %v1163, 2147483648
    %v1165 = vmul.f32 %v1164, 1.442695
    %v1166 = vpow.pop %v1165
    %v1167 = vadd.f32 %v1166, 1.0
    %v1168 = vrcp.pop %v1167
    %v1169 = vmul.f32 1.0, %v1168
    %v1170 = vadd.f32 %v1158, %v694
    %1172 = vrot.lane.b32.xlu0 %v1170, 64
    %v1173 = vpop.permute.xlu0 %1172
    %v1175 = vmul.f32 %v1169, %v1173
    %1177 = vrot.lane.b32.xlu0 %v1175, 64
    %v1178 = vpop.permute.xlu0 %1177
    %v1180 = vadd.f32 %v1115, %v1178
    %v1181 = vtanh.pop %v1180
    %v1182 = vsub.f32 %v1113, %v1181
    %1184 = vrot.lane.b32.xlu0 %v1182, 96
    %v1185 = vpop.permute.xlu0 %1184
    %v1187 = vmul.f32 %v1169, %v1185
    %1189 = vrot.lane.b32.xlu0 %v1187, 32
    %v1190 = vpop.permute.xlu0 %1189
    %v1192 = vadd.f32 %v1181, %v1190
    %s1193 = scalar_lea.vmem [#allocation2], 16
    %v1194 = vld [vmem:[%s1193] sm:$0x3]
    %v1195 = vpack.c.bf16 %v1192, %v1192
    %1197 = vrot.lane.b32.xlu0 %v1195, 64
    %v1198 = vpop.permute.xlu0 %1197
    %v1200 = vsel %vm641, %v1198, 0
    %1202 = vmatprep.subr.bf16.mxu0 0
    %1203 = vmatpush1.bf16.msra.mxu0 0
    %1204 = vmatprep.subr.bf16.mxu0 0
    %1205 = vmatpush1.bf16.msra.mxu0 0
    %1206 = vmatprep.subr.bf16.mxu0 0
    %1207 = vmatpush1.bf16.msra.mxu0 0
    %1208 = vmatprep.subr.bf16.mxu0 0
    %1209 = vmatpush1.bf16.msra.mxu0 0
    %1210 = vmatprep.subr.bf16.mxu0 0
    %1211 = vmatpush1.bf16.msra.mxu0 0
    %1212 = vmatprep.subr.bf16.mxu0 0
    %1213 = vmatpush1.bf16.msra.mxu0 0
    %1214 = vmatprep.subr.bf16.mxu0 0
    %1215 = vmatpush1.bf16.msra.mxu0 %v638
    %1216 = vmatprep.subr.bf16.mxu0 0
    %1217 = vmatpush1.bf16.msra.mxu0 %v637
    %1218 = vmatprep.subr.bf16.mxu0 0
    %1219 = vmatpush2.bf16.msra.mxu0 0
    %1220 = vmatprep.subr.bf16.mxu0 0
    %1221 = vmatpush2.bf16.msra.mxu0 0
    %1222 = vmatprep.subr.bf16.mxu0 0
    %1223 = vmatpush2.bf16.msra.mxu0 0
    %1224 = vmatprep.subr.bf16.mxu0 0
    %1225 = vmatpush2.bf16.msra.mxu0 0
    %1226 = vmatprep.subr.bf16.mxu0 0
    %1227 = vmatpush2.bf16.msra.mxu0 0
    %1228 = vmatprep.subr.bf16.mxu0 0
    %1229 = vmatpush2.bf16.msra.mxu0 0
    %1230 = vmatprep.subr.bf16.mxu0 0
    %1231 = vmatpush2.bf16.msra.mxu0 0
    %1232 = vmatprep.subr.bf16.mxu0 0
    %1233 = vmatpush2.bf16.msra.mxu0 0
    %1234 = vmatprep.mubr.bf16.mxu0 0
    %1235 = vmatmul.mubr.bf16.gmra.mxu0 %v1200
    %v1236 = vpop.f32.mrf.mxu0
    %v1237 = vadd.f32 0.0, %v1236
    %v1238 = vpop.f32.mrf.mxu0
    %v1239 = vpop.f32.mrf.mxu0
    %v1240 = vpop.f32.mrf.mxu0
    %1241 = vdwg.mxu0
    %v1242 = vadd.f32 %v1194, %v1237
    %v1243 = vxor.u32 %v1242, 2147483648
    %v1244 = vmul.f32 %v1243, 1.442695
    %v1245 = vpow.pop %v1244
    %v1246 = vadd.f32 %v1245, 1.0
    %v1247 = vrcp.pop %v1246
    %v1248 = vmul.f32 1.0, %v1247
    %v1249 = vadd.f32 %v1237, %v694
    %1251 = vrot.lane.b32.xlu0 %v1249, 64
    %v1252 = vpop.permute.xlu0 %1251
    %v1254 = vmul.f32 %v1248, %v1252
    %1256 = vrot.lane.b32.xlu0 %v1254, 64
    %v1257 = vpop.permute.xlu0 %1256
    %v1259 = vadd.f32 %v1194, %v1257
    %v1260 = vtanh.pop %v1259
    %v1261 = vsub.f32 %v1192, %v1260
    %1263 = vrot.lane.b32.xlu0 %v1261, 96
    %v1264 = vpop.permute.xlu0 %1263
    %v1266 = vmul.f32 %v1248, %v1264
    %1268 = vrot.lane.b32.xlu0 %v1266, 32
    %v1269 = vpop.permute.xlu0 %1268
    %v1271 = vadd.f32 %v1260, %v1269
    %s1272 = scalar_lea.vmem [#allocation2], 18
    %v1273 = vld [vmem:[%s1272] sm:$0x3]
    %v1274 = vpack.c.bf16 %v1271, %v1271
    %1276 = vrot.lane.b32.xlu0 %v1274, 64
    %v1277 = vpop.permute.xlu0 %1276
    %v1279 = vsel %vm641, %v1277, 0
    %1281 = vmatprep.subr.bf16.mxu0 0
    %1282 = vmatpush1.bf16.msra.mxu0 0
    %1283 = vmatprep.subr.bf16.mxu0 0
    %1284 = vmatpush1.bf16.msra.mxu0 0
    %1285 = vmatprep.subr.bf16.mxu0 0
    %1286 = vmatpush1.bf16.msra.mxu0 0
    %1287 = vmatprep.subr.bf16.mxu0 0
    %1288 = vmatpush1.bf16.msra.mxu0 0
    %1289 = vmatprep.subr.bf16.mxu0 0
    %1290 = vmatpush1.bf16.msra.mxu0 0
    %1291 = vmatprep.subr.bf16.mxu0 0
    %1292 = vmatpush1.bf16.msra.mxu0 0
    %1293 = vmatprep.subr.bf16.mxu0 0
    %1294 = vmatpush1.bf16.msra.mxu0 %v638
    %1295 = vmatprep.subr.bf16.mxu0 0
    %1296 = vmatpush1.bf16.msra.mxu0 %v637
    %1297 = vmatprep.subr.bf16.mxu0 0
    %1298 = vmatpush2.bf16.msra.mxu0 0
    %1299 = vmatprep.subr.bf16.mxu0 0
    %1300 = vmatpush2.bf16.msra.mxu0 0
    %1301 = vmatprep.subr.bf16.mxu0 0
    %1302 = vmatpush2.bf16.msra.mxu0 0
    %1303 = vmatprep.subr.bf16.mxu0 0
    %1304 = vmatpush2.bf16.msra.mxu0 0
    %1305 = vmatprep.subr.bf16.mxu0 0
    %1306 = vmatpush2.bf16.msra.mxu0 0
    %1307 = vmatprep.subr.bf16.mxu0 0
    %1308 = vmatpush2.bf16.msra.mxu0 0
    %1309 = vmatprep.subr.bf16.mxu0 0
    %1310 = vmatpush2.bf16.msra.mxu0 0
    %1311 = vmatprep.subr.bf16.mxu0 0
    %1312 = vmatpush2.bf16.msra.mxu0 0
    %1313 = vmatprep.mubr.bf16.mxu0 0
    %1314 = vmatmul.mubr.bf16.gmra.mxu0 %v1279
    %v1315 = vpop.f32.mrf.mxu0
    %v1316 = vadd.f32 0.0, %v1315
    %v1317 = vpop.f32.mrf.mxu0
    %v1318 = vpop.f32.mrf.mxu0
    %v1319 = vpop.f32.mrf.mxu0
    %1320 = vdwg.mxu0
    %v1321 = vadd.f32 %v1273, %v1316
    %v1322 = vxor.u32 %v1321, 2147483648
    %v1323 = vmul.f32 %v1322, 1.442695
    %v1324 = vpow.pop %v1323
    %v1325 = vadd.f32 %v1324, 1.0
    %v1326 = vrcp.pop %v1325
    %v1327 = vmul.f32 1.0, %v1326
    %v1328 = vadd.f32 %v1316, %v694
    %1330 = vrot.lane.b32.xlu0 %v1328, 64
    %v1331 = vpop.permute.xlu0 %1330
    %v1333 = vmul.f32 %v1327, %v1331
    %1335 = vrot.lane.b32.xlu0 %v1333, 64
    %v1336 = vpop.permute.xlu0 %1335
    %v1338 = vadd.f32 %v1273, %v1336
    %v1339 = vtanh.pop %v1338
    %v1340 = vsub.f32 %v1271, %v1339
    %1342 = vrot.lane.b32.xlu0 %v1340, 96
    %v1343 = vpop.permute.xlu0 %1342
    %v1345 = vmul.f32 %v1327, %v1343
    %1347 = vrot.lane.b32.xlu0 %v1345, 32
    %v1348 = vpop.permute.xlu0 %1347
    %v1350 = vadd.f32 %v1339, %v1348
    %s1351 = scalar_lea.vmem [#allocation2], 20
    %v1352 = vld [vmem:[%s1351] sm:$0x3]
    %v1353 = vpack.c.bf16 %v1350, %v1350
    %1355 = vrot.lane.b32.xlu0 %v1353, 64
    %v1356 = vpop.permute.xlu0 %1355
    %v1358 = vsel %vm641, %v1356, 0
    %1360 = vmatprep.subr.bf16.mxu0 0
    %1361 = vmatpush1.bf16.msra.mxu0 0
    %1362 = vmatprep.subr.bf16.mxu0 0
    %1363 = vmatpush1.bf16.msra.mxu0 0
    %1364 = vmatprep.subr.bf16.mxu0 0
    %1365 = vmatpush1.bf16.msra.mxu0 0
    %1366 = vmatprep.subr.bf16.mxu0 0
    %1367 = vmatpush1.bf16.msra.mxu0 0
    %1368 = vmatprep.subr.bf16.mxu0 0
    %1369 = vmatpush1.bf16.msra.mxu0 0
    %1370 = vmatprep.subr.bf16.mxu0 0
    %1371 = vmatpush1.bf16.msra.mxu0 0
    %1372 = vmatprep.subr.bf16.mxu0 0
    %1373 = vmatpush1.bf16.msra.mxu0 %v638
    %1374 = vmatprep.subr.bf16.mxu0 0
    %1375 = vmatpush1.bf16.msra.mxu0 %v637
    %1376 = vmatprep.subr.bf16.mxu0 0
    %1377 = vmatpush2.bf16.msra.mxu0 0
    %1378 = vmatprep.subr.bf16.mxu0 0
    %1379 = vmatpush2.bf16.msra.mxu0 0
    %1380 = vmatprep.subr.bf16.mxu0 0
    %1381 = vmatpush2.bf16.msra.mxu0 0
    %1382 = vmatprep.subr.bf16.mxu0 0
    %1383 = vmatpush2.bf16.msra.mxu0 0
    %1384 = vmatprep.subr.bf16.mxu0 0
    %1385 = vmatpush2.bf16.msra.mxu0 0
    %1386 = vmatprep.subr.bf16.mxu0 0
    %1387 = vmatpush2.bf16.msra.mxu0 0
    %1388 = vmatprep.subr.bf16.mxu0 0
    %1389 = vmatpush2.bf16.msra.mxu0 0
    %1390 = vmatprep.subr.bf16.mxu0 0
    %1391 = vmatpush2.bf16.msra.mxu0 0
    %1392 = vmatprep.mubr.bf16.mxu0 0
    %1393 = vmatmul.mubr.bf16.gmra.mxu0 %v1358
    %v1394 = vpop.f32.mrf.mxu0
    %v1395 = vadd.f32 0.0, %v1394
    %v1396 = vpop.f32.mrf.mxu0
    %v1397 = vpop.f32.mrf.mxu0
    %v1398 = vpop.f32.mrf.mxu0
    %1399 = vdwg.mxu0
    %v1400 = vadd.f32 %v1352, %v1395
    %v1401 = vxor.u32 %v1400, 2147483648
    %v1402 = vmul.f32 %v1401, 1.442695
    %v1403 = vpow.pop %v1402
    %v1404 = vadd.f32 %v1403, 1.0
    %v1405 = vrcp.pop %v1404
    %v1406 = vmul.f32 1.0, %v1405
    %v1407 = vadd.f32 %v1395, %v694
    %1409 = vrot.lane.b32.xlu0 %v1407, 64
    %v1410 = vpop.permute.xlu0 %1409
    %v1412 = vmul.f32 %v1406, %v1410
    %1414 = vrot.lane.b32.xlu0 %v1412, 64
    %v1415 = vpop.permute.xlu0 %1414
    %v1417 = vadd.f32 %v1352, %v1415
    %v1418 = vtanh.pop %v1417
    %v1419 = vsub.f32 %v1350, %v1418
    %1421 = vrot.lane.b32.xlu0 %v1419, 96
    %v1422 = vpop.permute.xlu0 %1421
    %v1424 = vmul.f32 %v1406, %v1422
    %1426 = vrot.lane.b32.xlu0 %v1424, 32
    %v1427 = vpop.permute.xlu0 %1426
    %v1429 = vadd.f32 %v1418, %v1427
    %s1430 = scalar_lea.vmem [#allocation2], 22
    %v1431 = vld [vmem:[%s1430] sm:$0x3]
    %v1432 = vpack.c.bf16 %v1429, %v1429
    %1434 = vrot.lane.b32.xlu0 %v1432, 64
    %v1435 = vpop.permute.xlu0 %1434
    %v1437 = vsel %vm641, %v1435, 0
    %1439 = vmatprep.subr.bf16.mxu0 0
    %1440 = vmatpush1.bf16.msra.mxu0 0
    %1441 = vmatprep.subr.bf16.mxu0 0
    %1442 = vmatpush1.bf16.msra.mxu0 0
    %1443 = vmatprep.subr.bf16.mxu0 0
    %1444 = vmatpush1.bf16.msra.mxu0 0
    %1445 = vmatprep.subr.bf16.mxu0 0
    %1446 = vmatpush1.bf16.msra.mxu0 0
    %1447 = vmatprep.subr.bf16.mxu0 0
    %1448 = vmatpush1.bf16.msra.mxu0 0
    %1449 = vmatprep.subr.bf16.mxu0 0
    %1450 = vmatpush1.bf16.msra.mxu0 0
    %1451 = vmatprep.subr.bf16.mxu0 0
    %1452 = vmatpush1.bf16.msra.mxu0 %v638
    %1453 = vmatprep.subr.bf16.mxu0 0
    %1454 = vmatpush1.bf16.msra.mxu0 %v637
    %1455 = vmatprep.subr.bf16.mxu0 0
    %1456 = vmatpush2.bf16.msra.mxu0 0
    %1457 = vmatprep.subr.bf16.mxu0 0
    %1458 = vmatpush2.bf16.msra.mxu0 0
    %1459 = vmatprep.subr.bf16.mxu0 0
    %1460 = vmatpush2.bf16.msra.mxu0 0
    %1461 = vmatprep.subr.bf16.mxu0 0
    %1462 = vmatpush2.bf16.msra.mxu0 0
    %1463 = vmatprep.subr.bf16.mxu0 0
    %1464 = vmatpush2.bf16.msra.mxu0 0
    %1465 = vmatprep.subr.bf16.mxu0 0
    %1466 = vmatpush2.bf16.msra.mxu0 0
    %1467 = vmatprep.subr.bf16.mxu0 0
    %1468 = vmatpush2.bf16.msra.mxu0 0
    %1469 = vmatprep.subr.bf16.mxu0 0
    %1470 = vmatpush2.bf16.msra.mxu0 0
    %1471 = vmatprep.mubr.bf16.mxu0 0
    %1472 = vmatmul.mubr.bf16.gmra.mxu0 %v1437
    %v1473 = vpop.f32.mrf.mxu0
    %v1474 = vadd.f32 0.0, %v1473
    %v1475 = vpop.f32.mrf.mxu0
    %v1476 = vpop.f32.mrf.mxu0
    %v1477 = vpop.f32.mrf.mxu0
    %1478 = vdwg.mxu0
    %v1479 = vadd.f32 %v1431, %v1474
    %v1480 = vxor.u32 %v1479, 2147483648
    %v1481 = vmul.f32 %v1480, 1.442695
    %v1482 = vpow.pop %v1481
    %v1483 = vadd.f32 %v1482, 1.0
    %v1484 = vrcp.pop %v1483
    %v1485 = vmul.f32 1.0, %v1484
    %v1486 = vadd.f32 %v1474, %v694
    %1488 = vrot.lane.b32.xlu0 %v1486, 64
    %v1489 = vpop.permute.xlu0 %1488
    %v1491 = vmul.f32 %v1485, %v1489
    %1493 = vrot.lane.b32.xlu0 %v1491, 64
    %v1494 = vpop.permute.xlu0 %1493
    %v1496 = vadd.f32 %v1431, %v1494
    %v1497 = vtanh.pop %v1496
    %v1498 = vsub.f32 %v1429, %v1497
    %1500 = vrot.lane.b32.xlu0 %v1498, 96
    %v1501 = vpop.permute.xlu0 %1500
    %v1503 = vmul.f32 %v1485, %v1501
    %1505 = vrot.lane.b32.xlu0 %v1503, 32
    %v1506 = vpop.permute.xlu0 %1505
    %v1508 = vadd.f32 %v1497, %v1506
    %s1509 = scalar_lea.vmem [#allocation2], 24
    %v1510 = vld [vmem:[%s1509] sm:$0x3]
    %v1511 = vpack.c.bf16 %v1508, %v1508
    %1513 = vrot.lane.b32.xlu0 %v1511, 64
    %v1514 = vpop.permute.xlu0 %1513
    %v1516 = vsel %vm641, %v1514, 0
    %1518 = vmatprep.subr.bf16.mxu0 0
    %1519 = vmatpush1.bf16.msra.mxu0 0
    %1520 = vmatprep.subr.bf16.mxu0 0
    %1521 = vmatpush1.bf16.msra.mxu0 0
    %1522 = vmatprep.subr.bf16.mxu0 0
    %1523 = vmatpush1.bf16.msra.mxu0 0
    %1524 = vmatprep.subr.bf16.mxu0 0
    %1525 = vmatpush1.bf16.msra.mxu0 0
    %1526 = vmatprep.subr.bf16.mxu0 0
    %1527 = vmatpush1.bf16.msra.mxu0 0
    %1528 = vmatprep.subr.bf16.mxu0 0
    %1529 = vmatpush1.bf16.msra.mxu0 0
    %1530 = vmatprep.subr.bf16.mxu0 0
    %1531 = vmatpush1.bf16.msra.mxu0 %v638
    %1532 = vmatprep.subr.bf16.mxu0 0
    %1533 = vmatpush1.bf16.msra.mxu0 %v637
    %1534 = vmatprep.subr.bf16.mxu0 0
    %1535 = vmatpush2.bf16.msra.mxu0 0
    %1536 = vmatprep.subr.bf16.mxu0 0
    %1537 = vmatpush2.bf16.msra.mxu0 0
    %1538 = vmatprep.subr.bf16.mxu0 0
    %1539 = vmatpush2.bf16.msra.mxu0 0
    %1540 = vmatprep.subr.bf16.mxu0 0
    %1541 = vmatpush2.bf16.msra.mxu0 0
    %1542 = vmatprep.subr.bf16.mxu0 0
    %1543 = vmatpush2.bf16.msra.mxu0 0
    %1544 = vmatprep.subr.bf16.mxu0 0
    %1545 = vmatpush2.bf16.msra.mxu0 0
    %1546 = vmatprep.subr.bf16.mxu0 0
    %1547 = vmatpush2.bf16.msra.mxu0 0
    %1548 = vmatprep.subr.bf16.mxu0 0
    %1549 = vmatpush2.bf16.msra.mxu0 0
    %1550 = vmatprep.mubr.bf16.mxu0 0
    %1551 = vmatmul.mubr.bf16.gmra.mxu0 %v1516
    %v1552 = vpop.f32.mrf.mxu0
    %v1553 = vadd.f32 0.0, %v1552
    %v1554 = vpop.f32.mrf.mxu0
    %v1555 = vpop.f32.mrf.mxu0
    %v1556 = vpop.f32.mrf.mxu0
    %1557 = vdwg.mxu0
    %v1558 = vadd.f32 %v1510, %v1553
    %v1559 = vxor.u32 %v1558, 2147483648
    %v1560 = vmul.f32 %v1559, 1.442695
    %v1561 = vpow.pop %v1560
    %v1562 = vadd.f32 %v1561, 1.0
    %v1563 = vrcp.pop %v1562
    %v1564 = vmul.f32 1.0, %v1563
    %v1565 = vadd.f32 %v1553, %v694
    %1567 = vrot.lane.b32.xlu0 %v1565, 64
    %v1568 = vpop.permute.xlu0 %1567
    %v1570 = vmul.f32 %v1564, %v1568
    %1572 = vrot.lane.b32.xlu0 %v1570, 64
    %v1573 = vpop.permute.xlu0 %1572
    %v1575 = vadd.f32 %v1510, %v1573
    %v1576 = vtanh.pop %v1575
    %v1577 = vsub.f32 %v1508, %v1576
    %1579 = vrot.lane.b32.xlu0 %v1577, 96
    %v1580 = vpop.permute.xlu0 %1579
    %v1582 = vmul.f32 %v1564, %v1580
    %1584 = vrot.lane.b32.xlu0 %v1582, 32
    %v1585 = vpop.permute.xlu0 %1584
    %v1587 = vadd.f32 %v1576, %v1585
    %s1588 = scalar_lea.vmem [#allocation2], 26
    %v1589 = vld [vmem:[%s1588] sm:$0x3]
    %v1590 = vpack.c.bf16 %v1587, %v1587
    %1592 = vrot.lane.b32.xlu0 %v1590, 64
    %v1593 = vpop.permute.xlu0 %1592
    %v1595 = vsel %vm641, %v1593, 0
    %1597 = vmatprep.subr.bf16.mxu0 0
    %1598 = vmatpush1.bf16.msra.mxu0 0
    %1599 = vmatprep.subr.bf16.mxu0 0
    %1600 = vmatpush1.bf16.msra.mxu0 0
    %1601 = vmatprep.subr.bf16.mxu0 0
    %1602 = vmatpush1.bf16.msra.mxu0 0
    %1603 = vmatprep.subr.bf16.mxu0 0
    %1604 = vmatpush1.bf16.msra.mxu0 0
    %1605 = vmatprep.subr.bf16.mxu0 0
    %1606 = vmatpush1.bf16.msra.mxu0 0
    %1607 = vmatprep.subr.bf16.mxu0 0
    %1608 = vmatpush1.bf16.msra.mxu0 0
    %1609 = vmatprep.subr.bf16.mxu0 0
    %1610 = vmatpush1.bf16.msra.mxu0 %v638
    %1611 = vmatprep.subr.bf16.mxu0 0
    %1612 = vmatpush1.bf16.msra.mxu0 %v637
    %1613 = vmatprep.subr.bf16.mxu0 0
    %1614 = vmatpush2.bf16.msra.mxu0 0
    %1615 = vmatprep.subr.bf16.mxu0 0
    %1616 = vmatpush2.bf16.msra.mxu0 0
    %1617 = vmatprep.subr.bf16.mxu0 0
    %1618 = vmatpush2.bf16.msra.mxu0 0
    %1619 = vmatprep.subr.bf16.mxu0 0
    %1620 = vmatpush2.bf16.msra.mxu0 0
    %1621 = vmatprep.subr.bf16.mxu0 0
    %1622 = vmatpush2.bf16.msra.mxu0 0
    %1623 = vmatprep.subr.bf16.mxu0 0
    %1624 = vmatpush2.bf16.msra.mxu0 0
    %1625 = vmatprep.subr.bf16.mxu0 0
    %1626 = vmatpush2.bf16.msra.mxu0 0
    %1627 = vmatprep.subr.bf16.mxu0 0
    %1628 = vmatpush2.bf16.msra.mxu0 0
    %1629 = vmatprep.mubr.bf16.mxu0 0
    %1630 = vmatmul.mubr.bf16.gmra.mxu0 %v1595
    %v1631 = vpop.f32.mrf.mxu0
    %v1632 = vadd.f32 0.0, %v1631
    %v1633 = vpop.f32.mrf.mxu0
    %v1634 = vpop.f32.mrf.mxu0
    %v1635 = vpop.f32.mrf.mxu0
    %1636 = vdwg.mxu0
    %v1637 = vadd.f32 %v1589, %v1632
    %v1638 = vxor.u32 %v1637, 2147483648
    %v1639 = vmul.f32 %v1638, 1.442695
    %v1640 = vpow.pop %v1639
    %v1641 = vadd.f32 %v1640, 1.0
    %v1642 = vrcp.pop %v1641
    %v1643 = vmul.f32 1.0, %v1642
    %v1644 = vadd.f32 %v1632, %v694
    %1646 = vrot.lane.b32.xlu0 %v1644, 64
    %v1647 = vpop.permute.xlu0 %1646
    %v1649 = vmul.f32 %v1643, %v1647
    %1651 = vrot.lane.b32.xlu0 %v1649, 64
    %v1652 = vpop.permute.xlu0 %1651
    %v1654 = vadd.f32 %v1589, %v1652
    %v1655 = vtanh.pop %v1654
    %v1656 = vsub.f32 %v1587, %v1655
    %1658 = vrot.lane.b32.xlu0 %v1656, 96
    %v1659 = vpop.permute.xlu0 %1658
    %v1661 = vmul.f32 %v1643, %v1659
    %1663 = vrot.lane.b32.xlu0 %v1661, 32
    %v1664 = vpop.permute.xlu0 %1663
    %v1666 = vadd.f32 %v1655, %v1664
    %s1667 = scalar_lea.vmem [#allocation2], 28
    %v1668 = vld [vmem:[%s1667] sm:$0x3]
    %v1669 = vpack.c.bf16 %v1666, %v1666
    %1671 = vrot.lane.b32.xlu0 %v1669, 64
    %v1672 = vpop.permute.xlu0 %1671
    %v1674 = vsel %vm641, %v1672, 0
    %1676 = vmatprep.subr.bf16.mxu0 0
    %1677 = vmatpush1.bf16.msra.mxu0 0
    %1678 = vmatprep.subr.bf16.mxu0 0
    %1679 = vmatpush1.bf16.msra.mxu0 0
    %1680 = vmatprep.subr.bf16.mxu0 0
    %1681 = vmatpush1.bf16.msra.mxu0 0
    %1682 = vmatprep.subr.bf16.mxu0 0
    %1683 = vmatpush1.bf16.msra.mxu0 0
    %1684 = vmatprep.subr.bf16.mxu0 0
    %1685 = vmatpush1.bf16.msra.mxu0 0
    %1686 = vmatprep.subr.bf16.mxu0 0
    %1687 = vmatpush1.bf16.msra.mxu0 0
    %1688 = vmatprep.subr.bf16.mxu0 0
    %1689 = vmatpush1.bf16.msra.mxu0 %v638
    %1690 = vmatprep.subr.bf16.mxu0 0
    %1691 = vmatpush1.bf16.msra.mxu0 %v637
    %1692 = vmatprep.subr.bf16.mxu0 0
    %1693 = vmatpush2.bf16.msra.mxu0 0
    %1694 = vmatprep.subr.bf16.mxu0 0
    %1695 = vmatpush2.bf16.msra.mxu0 0
    %1696 = vmatprep.subr.bf16.mxu0 0
    %1697 = vmatpush2.bf16.msra.mxu0 0
    %1698 = vmatprep.subr.bf16.mxu0 0
    %1699 = vmatpush2.bf16.msra.mxu0 0
    %1700 = vmatprep.subr.bf16.mxu0 0
    %1701 = vmatpush2.bf16.msra.mxu0 0
    %1702 = vmatprep.subr.bf16.mxu0 0
    %1703 = vmatpush2.bf16.msra.mxu0 0
    %1704 = vmatprep.subr.bf16.mxu0 0
    %1705 = vmatpush2.bf16.msra.mxu0 0
    %1706 = vmatprep.subr.bf16.mxu0 0
    %1707 = vmatpush2.bf16.msra.mxu0 0
    %1708 = vmatprep.mubr.bf16.mxu0 0
    %1709 = vmatmul.mubr.bf16.gmra.mxu0 %v1674
    %v1710 = vpop.f32.mrf.mxu0
    %v1711 = vadd.f32 0.0, %v1710
    %v1712 = vpop.f32.mrf.mxu0
    %v1713 = vpop.f32.mrf.mxu0
    %v1714 = vpop.f32.mrf.mxu0
    %1715 = vdwg.mxu0
    %v1716 = vadd.f32 %v1668, %v1711
    %v1717 = vxor.u32 %v1716, 2147483648
    %v1718 = vmul.f32 %v1717, 1.442695
    %v1719 = vpow.pop %v1718
    %v1720 = vadd.f32 %v1719, 1.0
    %v1721 = vrcp.pop %v1720
    %v1722 = vmul.f32 1.0, %v1721
    %v1723 = vadd.f32 %v1711, %v694
    %1725 = vrot.lane.b32.xlu0 %v1723, 64
    %v1726 = vpop.permute.xlu0 %1725
    %v1728 = vmul.f32 %v1722, %v1726
    %1730 = vrot.lane.b32.xlu0 %v1728, 64
    %v1731 = vpop.permute.xlu0 %1730
    %v1733 = vadd.f32 %v1668, %v1731
    %v1734 = vtanh.pop %v1733
    %v1735 = vsub.f32 %v1666, %v1734
    %1737 = vrot.lane.b32.xlu0 %v1735, 96
    %v1738 = vpop.permute.xlu0 %1737
    %v1740 = vmul.f32 %v1722, %v1738
    %1742 = vrot.lane.b32.xlu0 %v1740, 32
    %v1743 = vpop.permute.xlu0 %1742
    %v1745 = vadd.f32 %v1734, %v1743
    %s1746 = scalar_lea.vmem [#allocation2], 30
    %v1747 = vld [vmem:[%s1746] sm:$0x3]
    %v1748 = vpack.c.bf16 %v1745, %v1745
    %1750 = vrot.lane.b32.xlu0 %v1748, 64
    %v1751 = vpop.permute.xlu0 %1750
    %v1753 = vsel %vm641, %v1751, 0
    %1755 = vmatprep.subr.bf16.mxu0 0
    %1756 = vmatpush1.bf16.msra.mxu0 0
    %1757 = vmatprep.subr.bf16.mxu0 0
    %1758 = vmatpush1.bf16.msra.mxu0 0
    %1759 = vmatprep.subr.bf16.mxu0 0
    %1760 = vmatpush1.bf16.msra.mxu0 0
    %1761 = vmatprep.subr.bf16.mxu0 0
    %1762 = vmatpush1.bf16.msra.mxu0 0
    %1763 = vmatprep.subr.bf16.mxu0 0
    %1764 = vmatpush1.bf16.msra.mxu0 0
    %1765 = vmatprep.subr.bf16.mxu0 0
    %1766 = vmatpush1.bf16.msra.mxu0 0
    %1767 = vmatprep.subr.bf16.mxu0 0
    %1768 = vmatpush1.bf16.msra.mxu0 %v638
    %1769 = vmatprep.subr.bf16.mxu0 0
    %1770 = vmatpush1.bf16.msra.mxu0 %v637
    %1771 = vmatprep.subr.bf16.mxu0 0
    %1772 = vmatpush2.bf16.msra.mxu0 0
    %1773 = vmatprep.subr.bf16.mxu0 0
    %1774 = vmatpush2.bf16.msra.mxu0 0
    %1775 = vmatprep.subr.bf16.mxu0 0
    %1776 = vmatpush2.bf16.msra.mxu0 0
    %1777 = vmatprep.subr.bf16.mxu0 0
    %1778 = vmatpush2.bf16.msra.mxu0 0
    %1779 = vmatprep.subr.bf16.mxu0 0
    %1780 = vmatpush2.bf16.msra.mxu0 0
    %1781 = vmatprep.subr.bf16.mxu0 0
    %1782 = vmatpush2.bf16.msra.mxu0 0
    %1783 = vmatprep.subr.bf16.mxu0 0
    %1784 = vmatpush2.bf16.msra.mxu0 0
    %1785 = vmatprep.subr.bf16.mxu0 0
    %1786 = vmatpush2.bf16.msra.mxu0 0
    %1787 = vmatprep.mubr.bf16.mxu0 0
    %1788 = vmatmul.mubr.bf16.gmra.mxu0 %v1753
    %v1789 = vpop.f32.mrf.mxu0
    %v1790 = vadd.f32 0.0, %v1789
    %v1791 = vpop.f32.mrf.mxu0
    %v1792 = vpop.f32.mrf.mxu0
    %v1793 = vpop.f32.mrf.mxu0
    %1794 = vdwg.mxu0
    %v1795 = vadd.f32 %v1747, %v1790
    %v1796 = vxor.u32 %v1795, 2147483648
    %v1797 = vmul.f32 %v1796, 1.442695
    %v1798 = vpow.pop %v1797
    %v1799 = vadd.f32 %v1798, 1.0
    %v1800 = vrcp.pop %v1799
    %v1801 = vmul.f32 1.0, %v1800
    %v1802 = vadd.f32 %v1790, %v694
    %1804 = vrot.lane.b32.xlu0 %v1802, 64
    %v1805 = vpop.permute.xlu0 %1804
    %v1807 = vmul.f32 %v1801, %v1805
    %1809 = vrot.lane.b32.xlu0 %v1807, 64
    %v1810 = vpop.permute.xlu0 %1809
    %v1812 = vadd.f32 %v1747, %v1810
    %v1813 = vtanh.pop %v1812
    %v1814 = vsub.f32 %v1745, %v1813
    %1816 = vrot.lane.b32.xlu0 %v1814, 96
    %v1817 = vpop.permute.xlu0 %1816
    %v1819 = vmul.f32 %v1801, %v1817
    %1821 = vrot.lane.b32.xlu0 %v1819, 32
    %v1822 = vpop.permute.xlu0 %1821
    %v1824 = vadd.f32 %v1813, %v1822
    %v1825 = vld [vmem:[%s4] sm:$0xff]
    %v1826 = vld [vmem:[%s4 + $0x8] sm:$0xff]
    %v1827 = vld [vmem:[%s4 + $0x10] sm:$0xff]
    %v1828 = vld [vmem:[%s4 + $0x18] sm:$0xff]
    %v1829 = vlaneseq
    %v1830 = vshrl.u32 %v1829, 7
    %v1831 = vsub.s32 6, %v1830
    %v1832 = vrot.slane %v22, %v1831
    %1834 = vrot.lane.b32.xlu0 %v1824, 64
    %v1835 = vpop.permute.xlu0 %1834
    %v1836 = vsel %vm641, %v1835, 0
    %1838 = vmatprep.subr.mxu0 0.0
    %1839 = vmatpush1.msra.mxu0 0.0
    %1840 = vmatprep.subr.mxu0 0.0
    %1841 = vmatpush1.msra.mxu0 0.0
    %1842 = vmatprep.subr.mxu0 0.0
    %1843 = vmatpush1.msra.mxu0 0.0
    %1844 = vmatprep.subr.mxu0 0.0
    %1845 = vmatpush1.msra.mxu0 0.0
    %1846 = vmatprep.subr.mxu0 0.0
    %1847 = vmatpush1.msra.mxu0 0.0
    %1848 = vmatprep.subr.mxu0 0.0
    %1849 = vmatpush1.msra.mxu0 0.0
    %1850 = vmatprep.subr.mxu0 0.0
    %1851 = vmatpush1.msra.mxu0 0.0
    %1852 = vmatprep.subr.mxu0 0.0
    %1853 = vmatpush1.msra.mxu0 0.0
    %1854 = vmatprep.subr.mxu0 0.0
    %1855 = vmatpush1.msra.mxu0 0.0
    %1856 = vmatprep.subr.mxu0 0.0
    %1857 = vmatpush1.msra.mxu0 0.0
    %1858 = vmatprep.subr.mxu0 0.0
    %1859 = vmatpush1.msra.mxu0 0.0
    %1860 = vmatprep.subr.mxu0 0.0
    %1861 = vmatpush1.msra.mxu0 0.0
    %1862 = vmatprep.subr.mxu0 0.0
    %1863 = vmatpush1.msra.mxu0 %v1828
    %1864 = vmatprep.subr.mxu0 0.0
    %1865 = vmatpush1.msra.mxu0 %v1827
    %1866 = vmatprep.subr.mxu0 0.0
    %1867 = vmatpush1.msra.mxu0 %v1826
    %1868 = vmatprep.subr.mxu0 0.0
    %1869 = vmatpush1.msra.mxu0 %v1825
    %1870 = vmatprep.subr.mxu0 0.0
    %1871 = vmatpush2.msra.mxu0 0.0
    %1872 = vmatprep.subr.mxu0 0.0
    %1873 = vmatpush2.msra.mxu0 0.0
    %1874 = vmatprep.subr.mxu0 0.0
    %1875 = vmatpush2.msra.mxu0 0.0
    %1876 = vmatprep.subr.mxu0 0.0
    %1877 = vmatpush2.msra.mxu0 0.0
    %1878 = vmatprep.subr.mxu0 0.0
    %1879 = vmatpush2.msra.mxu0 0.0
    %1880 = vmatprep.subr.mxu0 0.0
    %1881 = vmatpush2.msra.mxu0 0.0
    %1882 = vmatprep.subr.mxu0 0.0
    %1883 = vmatpush2.msra.mxu0 0.0
    %1884 = vmatprep.subr.mxu0 0.0
    %1885 = vmatpush2.msra.mxu0 0.0
    %1886 = vmatprep.subr.mxu0 0.0
    %1887 = vmatpush2.msra.mxu0 0.0
    %1888 = vmatprep.subr.mxu0 0.0
    %1889 = vmatpush2.msra.mxu0 0.0
    %1890 = vmatprep.subr.mxu0 0.0
    %1891 = vmatpush2.msra.mxu0 0.0
    %1892 = vmatprep.subr.mxu0 0.0
    %1893 = vmatpush2.msra.mxu0 0.0
    %1894 = vmatprep.subr.mxu0 0.0
    %1895 = vmatpush2.msra.mxu0 0.0
    %1896 = vmatprep.subr.mxu0 0.0
    %1897 = vmatpush2.msra.mxu0 0.0
    %1898 = vmatprep.subr.mxu0 0.0
    %1899 = vmatpush2.msra.mxu0 0.0
    %1900 = vmatprep.subr.mxu0 0.0
    %1901 = vmatpush2.msra.mxu0 0.0
    %1902 = vmatprep.mubr.f32.mxu0 0.0
    %1903 = vmatmul.mubr.f32.gmra.mxu0 %v1836
    %v1904 = vpop.f32.mrf.mxu0
    %v1905 = vadd.f32 %v1832, %v1904
    %v1906 = vpop.f32.mrf.mxu0
    %1907 = vdwg.mxu0
    %vm1908 = vcmask 25600
    %1909 = vst.msk [vmem:[#allocation3] sm:$0x3] %vm1908, %v1905
    // Predicated region
    $region22: #{tpu_custom_call.1} parent=1 // pred_check
      _
    $region23: #{tpu_custom_call.1} parent=1 // pred_check_branch
      %1911 = sbr.rel (0) target = $region25
    $region24: #{tpu_custom_call.1} parent=1 // pred_region
      %s1913 = ssub.s32 32, 32
      %1914 = vsyncadd [#allocation4], %s1913
      %s1916 = sshll.u32 [#allocation3], 4
      %s1917 = int_to_ptr.vmem [resolvable:$true] %s1916
      %1919 = dma.vmem_to_hbm [thread:$0]  %s1917, 32, %s5, [#allocation4]
    $region25: #{tpu_custom_call.1} parent=1 // pred_fallthru
      _
    // Predicated region
    $region26: #{tpu_custom_call.1} parent=1 // pred_check
      _
    $region27: #{tpu_custom_call.1} parent=1 // pred_check_branch
      %1921 = sbr.rel (0) target = $region29
    $region28: #{tpu_custom_call.1} parent=1 // pred_region
      %1922 = dma.done [#allocation4], 32
    $region29: #{tpu_custom_call.1} parent=1 // pred_fallthru
      _
    %1923 = vsyncpa [#allocation4], 1

</llo_original>
